<compile_context>
chip_gen: v7x
topology: tpu7x:2x2x1
jax: 0.10.0
libtpu: 0.0.40
codegen_flags: <defaults>
</compile_context>

<pallas_src>
import jax
import jax.numpy as jnp
from jax import lax
from jax.experimental import pallas as pl
from jax.experimental.pallas import tpu as pltpu

# ----------------------------- config ---------------------------------------
NUM_LEVELS = 2
FEAT_PER_LEVEL = 8
IN_CHANNELS = NUM_LEVELS * FEAT_PER_LEVEL          # 16
HIDDEN_CHANNELS = 32
NUM_LAYERS = 3
OUT_CHANNELS = 4
OUT_PAD = 8                                        # output rows padded to full sublane
BASE_RES = 8                                       # level-l grid res = BASE_RES * 2**l
LEVEL_RES = tuple(BASE_RES * (2 ** l) for l in range(NUM_LEVELS))   # (8, 16)

MAX_TM = 1024            # points (lanes) per grid step; sweep 1024-2048 for huge M


def _choose_tile(m, max_tm=MAX_TM):
    """Pick the lane-tile size: as large as possible (amortize ~0.35us/step) but
    guaranteeing >=2 grid steps whenever M allows it (v7x has 2 TensorCores)."""
    half = -(-m // 2)                       # ceil(m / 2)
    tm = -(-half // 128) * 128              # round up to a multiple of 128
    return int(max(128, min(max_tm, tm)))


# ----------------------------- Pallas kernel --------------------------------
def _fused_features_mlp_kernel(uv_ref, g0_ref, g1_ref,
                               w0_ref, b0_ref, w1_ref, b1_ref, w2_ref, b2_ref,
                               o_ref):
    """Fused bilinear grid-sample + MLP, all in (channels, points) layout.

    uv_ref : (2, TM)        normalized (y, x) coords in [0, 1], points on lanes.
    g*_ref : (F, res*res)   flattened, transposed, lod-gated feature grids.
    w*_ref : (out, in)      transposed MLP weights;  b*_ref: (out, 1) biases.
    o_ref  : (OUT_PAD, TM)  output block (rows >= OUT_CHANNELS are zero).
    """
    tm = uv_ref.shape[1]
    uv = uv_ref[...]                                    # (2, TM)

    feats = []
    for g_ref, res in ((g0_ref, LEVEL_RES[0]), (g1_ref, LEVEL_RES[1])):
        shift = res.bit_length() - 1                    # res is a power of two
        posy = uv[0:1] * float(res - 1)                 # (1, TM)
        posx = uv[1:2] * float(res - 1)                 # (1, TM)
        # Dense bilinear "hat" weights: weight(cell yc,xc) =
        #   max(0, 1-|yc-posy|) * max(0, 1-|xc-posx|)
        # which is exactly the 4-corner bilinear weight (incl. edge clamping,
        # since uv is clipped to [0,1]).  Built on the VPU, contracted on MXU.
        idx = lax.broadcasted_iota(jnp.int32, (res * res, tm), 0)
        yc = (idx >> shift).astype(jnp.float32)         # idx // res
        xc = (idx & (res - 1)).astype(jnp.float32)      # idx %  res
        wy = jnp.maximum(1.0 - jnp.abs(yc - posy), 0.0)
        wx = jnp.maximum(1.0 - jnp.abs(xc - posx), 0.0)
        onehot = wy * wx                                # (res*res, TM)
        feats.append(jnp.dot(g_ref[...], onehot,
                             preferred_element_type=jnp.float32))   # (F, TM)

    h = jnp.concatenate(feats, axis=0)                  # (C_in, TM), 8-row aligned

    h = jnp.dot(w0_ref[...], h, preferred_element_type=jnp.float32) + b0_ref[...]
    h = jnp.maximum(h, 0.0)
    h = jnp.dot(w1_ref[...], h, preferred_element_type=jnp.float32) + b1_ref[...]
    h = jnp.maximum(h, 0.0)
    out = jnp.dot(w2_ref[...], h, preferred_element_type=jnp.float32) + b2_ref[...]
    o_ref[...] = out.astype(o_ref.dtype)                # (OUT_PAD, TM)


def features_mlp_fused_pallas(uv_t, grids_t, weights, biases):
    """uv_t: (2, M) normalized coords; grids_t: [(F, res^2) per level].
    Returns (OUT_CHANNELS, M)."""
    _, M = uv_t.shape
    tm = _choose_tile(M)
    n_steps = -(-M // tm)
    Mp = n_steps * tm
    if Mp != M:                                         # only the tiny uv stream pads
        uv_t = jnp.pad(uv_t, ((0, 0), (0, Mp - M)))

    w0t = weights[0].T                                  # (32, 16)
    w1t = weights[1].T                                  # (32, 32)
    w2t = weights[2].T                                  # (4, 32)
    b0 = biases[0].reshape(-1, 1)
    b1 = biases[1].reshape(-1, 1)
    b2 = biases[2].reshape(-1, 1)
    # Pad the last layer to OUT_PAD rows -> unmasked, full-sublane output stores.
    w2t = jnp.pad(w2t, ((0, OUT_PAD - w2t.shape[0]), (0, 0)))
    b2 = jnp.pad(b2, ((0, OUT_PAD - b2.shape[0]), (0, 0)))

    g0, g1 = grids_t

    def _const_spec(shape):
        return pl.BlockSpec(shape, lambda i: (0, 0))    # fetched once (constant block)

    out = pl.pallas_call(
        _fused_features_mlp_kernel,
        out_shape=jax.ShapeDtypeStruct((OUT_PAD, Mp), jnp.float32),
        grid_spec=pltpu.PrefetchScalarGridSpec(
            num_scalar_prefetch=0,
            grid=(n_steps,),
            in_specs=[
                pl.BlockSpec((2, tm), lambda i: (0, i)),        # per-point uv stream
                _const_spec(g0.shape), _const_spec(g1.shape),   # VMEM-resident grids
                _const_spec(w0t.shape), _const_spec(b0.shape),
                _const_spec(w1t.shape), _const_spec(b1.shape),
                _const_spec(w2t.shape), _const_spec(b2.shape),
            ],
            out_specs=pl.BlockSpec((OUT_PAD, tm), lambda i: (0, i)),
        ),
        compiler_params=pltpu.CompilerParams(
            dimension_semantics=("parallel",)),
    )(uv_t, g0, g1, w0t, b0, w1t, b1, w2t, b2)
    return out[:OUT_CHANNELS, :M]


# ----------------------------- Model wrapper ---------------------------------
def model_forward(coordinates, h, w, lod, grids, weights, biases):
    B, N, _ = coordinates.shape
    M = B * N
    hw = jnp.array([float(h), float(w)], jnp.float32)
    uv_t = jnp.clip(coordinates.reshape(M, 2) / hw, 0.0, 1.0).T      # (2, M)

    grids_t = []
    for lvl, g in enumerate(grids):
        res = g.shape[0]
        assert res == LEVEL_RES[lvl]
        # LOD gating: levels above `lod` contribute zero features (bilinear of
        # zeros is zero, matching the reference gather-then-scale semantics).
        scale = jnp.where(jnp.asarray(lod) >= lvl, 1.0, 0.0).astype(jnp.float32)
        grids_t.append((g.reshape(res * res, FEAT_PER_LEVEL) * scale).T)  # (F, res^2)

    out = features_mlp_fused_pallas(uv_t, grids_t, weights, biases)  # (OUT, M)
    # NOTE: consumers that accept channel-first output can use `out` directly and
    # skip this transpose; kept here to match the module's (B, N, C) contract.
    return out.T.reshape(B, N, OUT_CHANNELS)


# ----------------------------- reference (plain JAX) -------------------------
def gather_feature_corners(grids, coordinates, h, w, lod):
    """Reference gather of the 4 bilinear corners + fractional weights."""
    B, N, _ = coordinates.shape
    M = B * N
    uv = coordinates / jnp.array([float(h), float(w)], jnp.float32)
    uv = jnp.clip(uv, 0.0, 1.0)

    c00s, c01s, c10s, c11s, wxs, wys = [], [], [], [], [], []
    for lvl, grid in enumerate(grids):
        res = grid.shape[0]
        pos = uv * (res - 1)
        y0f = jnp.floor(pos[..., 0])
        x0f = jnp.floor(pos[..., 1])
        fy = pos[..., 0] - y0f
        fx = pos[..., 1] - x0f
        y0 = jnp.clip(y0f.astype(jnp.int32), 0, res - 1)
        x0 = jnp.clip(x0f.astype(jnp.int32), 0, res - 1)
        y1 = jnp.minimum(y0 + 1, res - 1)
        x1 = jnp.minimum(x0 + 1, res - 1)

        scale = jnp.where(jnp.asarray(lod) >= lvl, 1.0, 0.0).astype(jnp.float32)

        c00s.append((grid[y0, x0] * scale).reshape(M, FEAT_PER_LEVEL))
        c01s.append((grid[y0, x1] * scale).reshape(M, FEAT_PER_LEVEL))
        c10s.append((grid[y1, x0] * scale).reshape(M, FEAT_PER_LEVEL))
        c11s.append((grid[y1, x1] * scale).reshape(M, FEAT_PER_LEVEL))
        wxs.append(fx.reshape(M, 1))
        wys.append(fy.reshape(M, 1))

    corners = jnp.concatenate(
        [jnp.concatenate(c00s, axis=-1),
         jnp.concatenate(c01s, axis=-1),
         jnp.concatenate(c10s, axis=-1),
         jnp.concatenate(c11s, axis=-1)], axis=-1)      # (M, 4*C_in)
    wxy = jnp.concatenate(wxs + wys, axis=-1)           # (M, 2*L)
    return corners, wxy


def model_forward_ref(coordinates, h, w, lod, grids, weights, biases):
    B, N, _ = coordinates.shape
    corners, wxy = gather_feature_corners(grids, coordinates, h, w, lod)
    C = IN_CHANNELS
    c00 = corners[:, 0 * C:1 * C]
    c01 = corners[:, 1 * C:2 * C]
    c10 = corners[:, 2 * C:3 * C]
    c11 = corners[:, 3 * C:4 * C]
    wx = jnp.repeat(wxy[:, :NUM_LEVELS], FEAT_PER_LEVEL, axis=1)      # (M, C_in)
    wy = jnp.repeat(wxy[:, NUM_LEVELS:], FEAT_PER_LEVEL, axis=1)
    top = (1.0 - wx) * c00 + wx * c01
    bot = (1.0 - wx) * c10 + wx * c11
    x = (1.0 - wy) * top + wy * bot
    for li, (W, b) in enumerate(zip(weights, biases)):
        x = x @ W + b
        if li < len(weights) - 1:
            x = jnp.maximum(x, 0.0)
    return x.reshape(B, N, OUT_CHANNELS)


# ----------------------------- params ----------------------------------------
def init_params(key):
    dims = [IN_CHANNELS] + [HIDDEN_CHANNELS] * (NUM_LAYERS - 1) + [OUT_CHANNELS]
    keys = jax.random.split(key, 2 * len(dims) + NUM_LEVELS + 2)
    weights, biases = [], []
    k_idx = 0
    for i in range(len(dims) - 1):
        fan_in = dims[i]
        weights.append(
            jax.random.normal(keys[k_idx], (dims[i], dims[i + 1]), jnp.float32)
            * (1.0 / jnp.sqrt(fan_in))
        )
        k_idx += 1
        biases.append(jax.random.normal(keys[k_idx], (dims[i + 1],), jnp.float32) * 0.01)
        k_idx += 1
    grids = []
    for lvl in range(NUM_LEVELS):
        res = BASE_RES * (2 ** lvl)
        grids.append(
            jax.random.normal(keys[k_idx], (res, res, FEAT_PER_LEVEL), jnp.float32) * 0.1
        )
        k_idx += 1
    # buffers (mean / std), unused in forward but part of the module state
    mean = jax.random.normal(keys[k_idx], (OUT_CHANNELS,), jnp.float32); k_idx += 1
    std = jax.random.normal(keys[k_idx], (OUT_CHANNELS,), jnp.float32)
    return weights, biases, grids, mean, std


# ----------------------------- main ------------------------------------------
if __name__ == "__main__":
    key = jax.random.PRNGKey(0)
    k_param, k_coord = jax.random.split(key)

    weights, biases, grids, mean, std = init_params(k_param)

    B, N = 2, 256
    H, W = 16, 16
    lod = 1
    # pixel-space (y, x) coordinates in [0, H) x [0, W)
    coordinates = jax.random.uniform(
        k_coord, (B, N, 2), jnp.float32,
        minval=0.0, maxval=1.0) * jnp.array([float(H), float(W)], jnp.float32)

    out = model_forward(coordinates, H, W, lod, grids, weights, biases)
    out = jax.block_until_ready(out)

    ref = model_forward_ref(coordinates, H, W, lod, grids, weights, biases)
    assert out.shape == (B, N, OUT_CHANNELS)
    assert jnp.allclose(out, ref, atol=1e-4, rtol=1e-4), "mismatch vs JAX reference"

    print("KERNEL_OK")
</pallas_src>

<mosaic_0001>
module attributes {stable_mosaic.version = 11 : i64} {
  func.func @_fused_features_mlp_kernel(%arg0: i32, %arg1: memref<2x256xf32, #tpu.memory_space<vmem>>, %arg2: memref<8x64xf32, #tpu.memory_space<vmem>>, %arg3: memref<8x256xf32, #tpu.memory_space<vmem>>, %arg4: memref<32x16xf32, #tpu.memory_space<vmem>>, %arg5: memref<32x1xf32, #tpu.memory_space<vmem>>, %arg6: memref<32x32xf32, #tpu.memory_space<vmem>>, %arg7: memref<32x1xf32, #tpu.memory_space<vmem>>, %arg8: memref<8x32xf32, #tpu.memory_space<vmem>>, %arg9: memref<8x1xf32, #tpu.memory_space<vmem>>, %arg10: memref<8x256xf32, #tpu.memory_space<vmem>>) attributes {dimension_semantics = [#tpu.dimension_semantics<parallel>], iteration_bounds = array<i64: 2>, scalar_prefetch = 0 : i64, scratch_operands = 0 : i64, tpu.core_type = #tpu.core_type<tc>, window_params = [{transform_indices = @transform_0, window_bounds = array<i64: 2, 256>}, {pipeline_mode = #tpu.pipeline_mode<synchronous>, transform_indices = @transform_1, window_bounds = array<i64: 8, 64>}, {pipeline_mode = #tpu.pipeline_mode<synchronous>, transform_indices = @transform_2, window_bounds = array<i64: 8, 256>}, {pipeline_mode = #tpu.pipeline_mode<synchronous>, transform_indices = @transform_3, window_bounds = array<i64: 32, 16>}, {pipeline_mode = #tpu.pipeline_mode<synchronous>, transform_indices = @transform_4, window_bounds = array<i64: 32, 1>}, {pipeline_mode = #tpu.pipeline_mode<synchronous>, transform_indices = @transform_5, window_bounds = array<i64: 32, 32>}, {pipeline_mode = #tpu.pipeline_mode<synchronous>, transform_indices = @transform_6, window_bounds = array<i64: 32, 1>}, {pipeline_mode = #tpu.pipeline_mode<synchronous>, transform_indices = @transform_7, window_bounds = array<i64: 8, 32>}, {pipeline_mode = #tpu.pipeline_mode<synchronous>, transform_indices = @transform_8, window_bounds = array<i64: 8, 1>}, {transform_indices = @transform_9, window_bounds = array<i64: 8, 256>}]} {
    %c0 = arith.constant 0 : index
    %c0_0 = arith.constant 0 : index
    %0 = vector.load %arg1[%c0, %c0_0] : memref<2x256xf32, #tpu.memory_space<vmem>>, vector<2x256xf32>
    %1 = vector.extract_strided_slice %0 {offsets = [0, 0], sizes = [1, 256], strides = [1, 1]} : vector<2x256xf32> to vector<1x256xf32>
    %cst = arith.constant 7.000000e+00 : f32
    %2 = vector.broadcast %cst : f32 to vector<1x256xf32>
    %3 = arith.mulf %1, %2 : vector<1x256xf32>
    %4 = vector.extract_strided_slice %0 {offsets = [1, 0], sizes = [1, 256], strides = [1, 1]} : vector<2x256xf32> to vector<1x256xf32>
    %cst_1 = arith.constant 7.000000e+00 : f32
    %5 = vector.broadcast %cst_1 : f32 to vector<1x256xf32>
    %6 = arith.mulf %4, %5 : vector<1x256xf32>
    %7 = tpu.iota {dimensions = array<i32: 0>} : vector<64x256xi32>
    %c3_i32 = arith.constant 3 : i32
    %8 = vector.broadcast %c3_i32 : i32 to vector<64x256xi32>
    %9 = arith.shrsi %7, %8 : vector<64x256xi32>
    %10 = arith.sitofp %9 : vector<64x256xi32> to vector<64x256xf32>
    %c7_i32 = arith.constant 7 : i32
    %11 = vector.broadcast %c7_i32 : i32 to vector<64x256xi32>
    %12 = arith.andi %7, %11 : vector<64x256xi32>
    %13 = arith.sitofp %12 : vector<64x256xi32> to vector<64x256xf32>
    %14 = vector.broadcast %3 : vector<1x256xf32> to vector<64x256xf32>
    %15 = arith.subf %10, %14 : vector<64x256xf32>
    %16 = math.absf %15 : vector<64x256xf32>
    %cst_2 = arith.constant 1.000000e+00 : f32
    %17 = vector.broadcast %cst_2 : f32 to vector<64x256xf32>
    %18 = arith.subf %17, %16 : vector<64x256xf32>
    %cst_3 = arith.constant 0.000000e+00 : f32
    %19 = vector.broadcast %cst_3 : f32 to vector<64x256xf32>
    %20 = arith.maximumf %18, %19 : vector<64x256xf32>
    %21 = vector.broadcast %6 : vector<1x256xf32> to vector<64x256xf32>
    %22 = arith.subf %13, %21 : vector<64x256xf32>
    %23 = math.absf %22 : vector<64x256xf32>
    %cst_4 = arith.constant 1.000000e+00 : f32
    %24 = vector.broadcast %cst_4 : f32 to vector<64x256xf32>
    %25 = arith.subf %24, %23 : vector<64x256xf32>
    %cst_5 = arith.constant 0.000000e+00 : f32
    %26 = vector.broadcast %cst_5 : f32 to vector<64x256xf32>
    %27 = arith.maximumf %25, %26 : vector<64x256xf32>
    %28 = arith.mulf %20, %27 : vector<64x256xf32>
    %c0_6 = arith.constant 0 : index
    %c0_7 = arith.constant 0 : index
    %29 = vector.load %arg2[%c0_6, %c0_7] : memref<8x64xf32, #tpu.memory_space<vmem>>, vector<8x64xf32>
    %cst_8 = arith.constant dense<0.000000e+00> : vector<8x256xf32>
    %30 = tpu.matmul %29, %28, %cst_8 {dimension_numbers = #tpu.dot_dimension_numbers<[1], [0], [0], [1], [0, 0, 1, 1], [], []>} : vector<8x64xf32>, vector<64x256xf32>, vector<8x256xf32> -> vector<8x256xf32>
    %31 = vector.extract_strided_slice %0 {offsets = [0, 0], sizes = [1, 256], strides = [1, 1]} : vector<2x256xf32> to vector<1x256xf32>
    %cst_9 = arith.constant 1.500000e+01 : f32
    %32 = vector.broadcast %cst_9 : f32 to vector<1x256xf32>
    %33 = arith.mulf %31, %32 : vector<1x256xf32>
    %34 = vector.extract_strided_slice %0 {offsets = [1, 0], sizes = [1, 256], strides = [1, 1]} : vector<2x256xf32> to vector<1x256xf32>
    %cst_10 = arith.constant 1.500000e+01 : f32
    %35 = vector.broadcast %cst_10 : f32 to vector<1x256xf32>
    %36 = arith.mulf %34, %35 : vector<1x256xf32>
    %37 = tpu.iota {dimensions = array<i32: 0>} : vector<256x256xi32>
    %c4_i32 = arith.constant 4 : i32
    %38 = vector.broadcast %c4_i32 : i32 to vector<256x256xi32>
    %39 = arith.shrsi %37, %38 : vector<256x256xi32>
    %40 = arith.sitofp %39 : vector<256x256xi32> to vector<256x256xf32>
    %c15_i32 = arith.constant 15 : i32
    %41 = vector.broadcast %c15_i32 : i32 to vector<256x256xi32>
    %42 = arith.andi %37, %41 : vector<256x256xi32>
    %43 = arith.sitofp %42 : vector<256x256xi32> to vector<256x256xf32>
    %44 = vector.broadcast %33 : vector<1x256xf32> to vector<256x256xf32>
    %45 = arith.subf %40, %44 : vector<256x256xf32>
    %46 = math.absf %45 : vector<256x256xf32>
    %cst_11 = arith.constant 1.000000e+00 : f32
    %47 = vector.broadcast %cst_11 : f32 to vector<256x256xf32>
    %48 = arith.subf %47, %46 : vector<256x256xf32>
    %cst_12 = arith.constant 0.000000e+00 : f32
    %49 = vector.broadcast %cst_12 : f32 to vector<256x256xf32>
    %50 = arith.maximumf %48, %49 : vector<256x256xf32>
    %51 = vector.broadcast %36 : vector<1x256xf32> to vector<256x256xf32>
    %52 = arith.subf %43, %51 : vector<256x256xf32>
    %53 = math.absf %52 : vector<256x256xf32>
    %cst_13 = arith.constant 1.000000e+00 : f32
    %54 = vector.broadcast %cst_13 : f32 to vector<256x256xf32>
    %55 = arith.subf %54, %53 : vector<256x256xf32>
    %cst_14 = arith.constant 0.000000e+00 : f32
    %56 = vector.broadcast %cst_14 : f32 to vector<256x256xf32>
    %57 = arith.maximumf %55, %56 : vector<256x256xf32>
    %58 = arith.mulf %50, %57 : vector<256x256xf32>
    %c0_15 = arith.constant 0 : index
    %c0_16 = arith.constant 0 : index
    %59 = vector.load %arg3[%c0_15, %c0_16] : memref<8x256xf32, #tpu.memory_space<vmem>>, vector<8x256xf32>
    %cst_17 = arith.constant dense<0.000000e+00> : vector<8x256xf32>
    %60 = tpu.matmul %59, %58, %cst_17 {dimension_numbers = #tpu.dot_dimension_numbers<[1], [0], [0], [1], [0, 0, 1, 1], [], []>} : vector<8x256xf32>, vector<256x256xf32>, vector<8x256xf32> -> vector<8x256xf32>
    %61 = tpu.concatenate %30, %60 in 0 : vector<8x256xf32>, vector<8x256xf32> -> vector<16x256xf32>
    %c0_18 = arith.constant 0 : index
    %c0_19 = arith.constant 0 : index
    %62 = vector.load %arg4[%c0_18, %c0_19] : memref<32x16xf32, #tpu.memory_space<vmem>>, vector<32x16xf32>
    %cst_20 = arith.constant dense<0.000000e+00> : vector<32x256xf32>
    %63 = tpu.matmul %62, %61, %cst_20 {dimension_numbers = #tpu.dot_dimension_numbers<[1], [0], [0], [1], [0, 0, 1, 1], [], []>} : vector<32x16xf32>, vector<16x256xf32>, vector<32x256xf32> -> vector<32x256xf32>
    %c0_21 = arith.constant 0 : index
    %c0_22 = arith.constant 0 : index
    %64 = vector.load %arg5[%c0_21, %c0_22] : memref<32x1xf32, #tpu.memory_space<vmem>>, vector<32x1xf32>
    %65 = vector.broadcast %64 : vector<32x1xf32> to vector<32x256xf32>
    %66 = arith.addf %63, %65 : vector<32x256xf32>
    %cst_23 = arith.constant 0.000000e+00 : f32
    %67 = vector.broadcast %cst_23 : f32 to vector<32x256xf32>
    %68 = arith.maximumf %66, %67 : vector<32x256xf32>
    %c0_24 = arith.constant 0 : index
    %c0_25 = arith.constant 0 : index
    %69 = vector.load %arg6[%c0_24, %c0_25] : memref<32x32xf32, #tpu.memory_space<vmem>>, vector<32x32xf32>
    %cst_26 = arith.constant dense<0.000000e+00> : vector<32x256xf32>
    %70 = tpu.matmul %69, %68, %cst_26 {dimension_numbers = #tpu.dot_dimension_numbers<[1], [0], [0], [1], [0, 0, 1, 1], [], []>} : vector<32x32xf32>, vector<32x256xf32>, vector<32x256xf32> -> vector<32x256xf32>
    %c0_27 = arith.constant 0 : index
    %c0_28 = arith.constant 0 : index
    %71 = vector.load %arg7[%c0_27, %c0_28] : memref<32x1xf32, #tpu.memory_space<vmem>>, vector<32x1xf32>
    %72 = vector.broadcast %71 : vector<32x1xf32> to vector<32x256xf32>
    %73 = arith.addf %70, %72 : vector<32x256xf32>
    %cst_29 = arith.constant 0.000000e+00 : f32
    %74 = vector.broadcast %cst_29 : f32 to vector<32x256xf32>
    %75 = arith.maximumf %73, %74 : vector<32x256xf32>
    %c0_30 = arith.constant 0 : index
    %c0_31 = arith.constant 0 : index
    %76 = vector.load %arg8[%c0_30, %c0_31] : memref<8x32xf32, #tpu.memory_space<vmem>>, vector<8x32xf32>
    %cst_32 = arith.constant dense<0.000000e+00> : vector<8x256xf32>
    %77 = tpu.matmul %76, %75, %cst_32 {dimension_numbers = #tpu.dot_dimension_numbers<[1], [0], [0], [1], [0, 0, 1, 1], [], []>} : vector<8x32xf32>, vector<32x256xf32>, vector<8x256xf32> -> vector<8x256xf32>
    %c0_33 = arith.constant 0 : index
    %c0_34 = arith.constant 0 : index
    %78 = vector.load %arg9[%c0_33, %c0_34] : memref<8x1xf32, #tpu.memory_space<vmem>>, vector<8x1xf32>
    %79 = vector.broadcast %78 : vector<8x1xf32> to vector<8x256xf32>
    %80 = arith.addf %77, %79 : vector<8x256xf32>
    %c0_35 = arith.constant 0 : index
    %c0_36 = arith.constant 0 : index
    %81 = vector.load %arg10[%c0_35, %c0_36] : memref<8x256xf32, #tpu.memory_space<vmem>>, vector<8x256xf32>
    tpu.vector_store %arg10[%c0_35, %c0_36], %80 {strides = array<i32>} : memref<8x256xf32, #tpu.memory_space<vmem>>, vector<8x256xf32>,
    return
  }
  func.func @transform_0(%arg0: i32) -> (i32, i32) {
    %c0_i32 = arith.constant 0 : i32
    %c0_i32_0 = arith.constant 0 : i32
    return %c0_i32, %arg0 : i32, i32
  }
  func.func @transform_1(%arg0: i32) -> (i32, i32) {
    %c0_i32 = arith.constant 0 : i32
    %c0_i32_0 = arith.constant 0 : i32
    %c0_i32_1 = arith.constant 0 : i32
    return %c0_i32, %c0_i32_0 : i32, i32
  }
  func.func @transform_2(%arg0: i32) -> (i32, i32) {
    %c0_i32 = arith.constant 0 : i32
    %c0_i32_0 = arith.constant 0 : i32
    %c0_i32_1 = arith.constant 0 : i32
    return %c0_i32, %c0_i32_0 : i32, i32
  }
  func.func @transform_3(%arg0: i32) -> (i32, i32) {
    %c0_i32 = arith.constant 0 : i32
    %c0_i32_0 = arith.constant 0 : i32
    %c0_i32_1 = arith.constant 0 : i32
    return %c0_i32, %c0_i32_0 : i32, i32
  }
  func.func @transform_4(%arg0: i32) -> (i32, i32) {
    %c0_i32 = arith.constant 0 : i32
    %c0_i32_0 = arith.constant 0 : i32
    %c0_i32_1 = arith.constant 0 : i32
    return %c0_i32, %c0_i32_0 : i32, i32
  }
  func.func @transform_5(%arg0: i32) -> (i32, i32) {
    %c0_i32 = arith.constant 0 : i32
    %c0_i32_0 = arith.constant 0 : i32
    %c0_i32_1 = arith.constant 0 : i32
    return %c0_i32, %c0_i32_0 : i32, i32
  }
  func.func @transform_6(%arg0: i32) -> (i32, i32) {
    %c0_i32 = arith.constant 0 : i32
    %c0_i32_0 = arith.constant 0 : i32
    %c0_i32_1 = arith.constant 0 : i32
    return %c0_i32, %c0_i32_0 : i32, i32
  }
  func.func @transform_7(%arg0: i32) -> (i32, i32) {
    %c0_i32 = arith.constant 0 : i32
    %c0_i32_0 = arith.constant 0 : i32
    %c0_i32_1 = arith.constant 0 : i32
    return %c0_i32, %c0_i32_0 : i32, i32
  }
  func.func @transform_8(%arg0: i32) -> (i32, i32) {
    %c0_i32 = arith.constant 0 : i32
    %c0_i32_0 = arith.constant 0 : i32
    %c0_i32_1 = arith.constant 0 : i32
    return %c0_i32, %c0_i32_0 : i32, i32
  }
  func.func @transform_9(%arg0: i32) -> (i32, i32) {
    %c0_i32 = arith.constant 0 : i32
    %c0_i32_0 = arith.constant 0 : i32
    return %c0_i32, %arg0 : i32, i32
  }
}

</mosaic_0001>

<llo_original>
// kernel: tpu_custom_call.1
$region0: #{tpu_custom_call.1}
  #allocation0 [shape = 'u32[]', space=smem, size = 0x4, offset = 0x4, fixed_abs, tag = 'smem constant byte address 0x4 - core index']
  #allocation1 [shape = 'u32[144,128]{1,0:T(1,128)}', space=vmem, size = 0x12000, scoped, tag = 'internal scratch']
  %s0 = inlined_call_operand.vmem [shape: f32[2,512], index: 0, kind: input, shape index: {}]
  %s1 = inlined_call_operand.vmem [shape: f32[8,64], index: 1, kind: input, shape index: {}]
  %s2 = inlined_call_operand.vmem [shape: f32[8,256], index: 2, kind: input, shape index: {}]
  %s3 = inlined_call_operand.vmem [shape: f32[32,16], index: 3, kind: input, shape index: {}]
  %s4 = inlined_call_operand.vmem [shape: f32[32,1], index: 4, kind: input, shape index: {}]
  %s5 = inlined_call_operand.vmem [shape: f32[32,32], index: 5, kind: input, shape index: {}]
  %s6 = inlined_call_operand.vmem [shape: f32[32,1], index: 6, kind: input, shape index: {}]
  %s7 = inlined_call_operand.vmem [shape: f32[8,32], index: 7, kind: input, shape index: {}]
  %s8 = inlined_call_operand.vmem [shape: f32[8,1], index: 8, kind: input, shape index: {}]
  %s9 = inlined_call_operand.hbm [shape: f32[8,512], index: 9, kind: output, shape index: {}]
  %s10 = sld [smem:[#allocation0]]
  $region69: #{tpu_custom_call.1} parent=0
    _
  %s12 = ssub.s32 1, %s10
  %s13 = scalar_select 0, %s12, %s10
  $region1: #{tpu_custom_call.1} parent=0
    #allocation2 [shape = 'u8[16384]{0}', space=vmem, size = 0x4000, scoped, tag = 'output window, operand 0']
    #allocation3 [shape = 's32[2]{0}', space=sflag, size = 0x8, scoped, tag = 'scoped memory for tpu_custom_call.1']
    %14 = vsyncpa [#allocation3], 0
    %s15 = scalar_lea.sflag [#allocation3], 1
    %16 = vsyncpa %s15, 0
    loop: start=0, step=1, limit=4
    $region2: #{tpu_custom_call.1} parent=1 // loop_pre_header
      _
    $region3: #{tpu_custom_call.1} parent=1 // loop_header
      %s18 = sphi 0, %s22
      %p19 = scmp.ge.s32.totalorder %s18, 4
      %s28 = sphi 0, %s30
      %s31 = sphi 0, %s28
      %s32 = sphi 0, %s31
      %s48 = sphi 0, %s32
      %s52 = sphi 0, %s52
      %s54 = sphi 0, %s52
      %s55 = sphi 0, %s54
      %s69 = sphi 0, %s55
      %s73 = sphi 0, %s73
      %s75 = sphi 0, %s73
      %s76 = sphi 0, %s75
      %s90 = sphi 0, %s76
      %s94 = sphi 0, %s94
      %s96 = sphi 0, %s94
      %s97 = sphi 0, %s96
      %s111 = sphi 0, %s97
      %s115 = sphi 0, %s115
      %s117 = sphi 0, %s115
      %s118 = sphi 0, %s117
      %s132 = sphi 0, %s118
      %s136 = sphi 0, %s136
      %s138 = sphi 0, %s136
      %s139 = sphi 0, %s138
      %s153 = sphi 0, %s139
      %s157 = sphi 0, %s157
      %s159 = sphi 0, %s157
      %s160 = sphi 0, %s159
      %s174 = sphi 0, %s160
      %s178 = sphi 0, %s178
      %s180 = sphi 0, %s178
      %s181 = sphi 0, %s180
      %s195 = sphi 0, %s181
      %s199 = sphi 0, %s199
      %s201 = sphi 0, %s199
      %s202 = sphi 0, %s201
      %s216 = sphi 0, %s202
      %s222 = sphi 0, %s224
      %s225 = sphi 0, %s222
      %s226 = sphi 0, %s225
      %s242 = sphi 0, %s226
    $region4: #{tpu_custom_call.1} parent=1 // loop_header_branch
      %21 = sbr.rel (%p19) target = $region8
    $region5: #{tpu_custom_call.1} parent=1 // loop_body
      %s23 = ssub.s32 %s18, 1
      %s24 = ssub.s32 %s18, 2
      %s25 = sadd.s32 %s18, 1
      %s26 = ssub.s32 %s18, %s25
      %p27 = scmp.eq.s32.totalorder %s26, 0
      %s29 = sadd.s32 %s28, 1
      %s30 = scalar_select %p27, %s28, %s29
      %p33 = pneg %p27
      %p34 = scmp.eq.s32.totalorder %s18, 1
      %p35 = por %p33, %p34
      %p36 = scmp.ne.s32.totalorder %s28, %s31
      %p37 = scmp.eq.s32.totalorder %s18, 0
      %p38 = por %p36, %p37
      %p39 = scmp.ne.s32.totalorder %s28, %s31
      %p40 = scmp.eq.s32.totalorder %s23, 1
      %p41 = por %p39, %p40
      %p42 = scmp.ne.s32.totalorder %s31, %s32
      %p43 = scmp.eq.s32.totalorder %s23, 0
      %p44 = por %p42, %p43
      %p45 = scmp.ne.s32.totalorder %s31, %s32
      %p46 = scmp.eq.s32.totalorder %s24, 1
      %p47 = por %p45, %p46
      %p49 = scmp.ne.s32.totalorder %s32, %s48
      %p50 = scmp.eq.s32.totalorder %s24, 0
      %p51 = por %p49, %p50
      %s53 = sadd.s32 %s52, 1
      %p56 = scmp.eq.s32.totalorder %s18, 1
      %p57 = scmp.ne.s32.totalorder %s52, %s54
      %p58 = scmp.eq.s32.totalorder %s18, 0
      %p59 = por %p57, %p58
      %p60 = scmp.ne.s32.totalorder %s52, %s54
      %p61 = scmp.eq.s32.totalorder %s23, 1
      %p62 = por %p60, %p61
      %p63 = scmp.ne.s32.totalorder %s54, %s55
      %p64 = scmp.eq.s32.totalorder %s23, 0
      %p65 = por %p63, %p64
      %p66 = scmp.ne.s32.totalorder %s54, %s55
      %p67 = scmp.eq.s32.totalorder %s24, 1
      %p68 = por %p66, %p67
      %p70 = scmp.ne.s32.totalorder %s55, %s69
      %p71 = scmp.eq.s32.totalorder %s24, 0
      %p72 = por %p70, %p71
      %s74 = sadd.s32 %s73, 1
      %p77 = scmp.eq.s32.totalorder %s18, 1
      %p78 = scmp.ne.s32.totalorder %s73, %s75
      %p79 = scmp.eq.s32.totalorder %s18, 0
      %p80 = por %p78, %p79
      %p81 = scmp.ne.s32.totalorder %s73, %s75
      %p82 = scmp.eq.s32.totalorder %s23, 1
      %p83 = por %p81, %p82
      %p84 = scmp.ne.s32.totalorder %s75, %s76
      %p85 = scmp.eq.s32.totalorder %s23, 0
      %p86 = por %p84, %p85
      %p87 = scmp.ne.s32.totalorder %s75, %s76
      %p88 = scmp.eq.s32.totalorder %s24, 1
      %p89 = por %p87, %p88
      %p91 = scmp.ne.s32.totalorder %s76, %s90
      %p92 = scmp.eq.s32.totalorder %s24, 0
      %p93 = por %p91, %p92
      %s95 = sadd.s32 %s94, 1
      %p98 = scmp.eq.s32.totalorder %s18, 1
      %p99 = scmp.ne.s32.totalorder %s94, %s96
      %p100 = scmp.eq.s32.totalorder %s18, 0
      %p101 = por %p99, %p100
      %p102 = scmp.ne.s32.totalorder %s94, %s96
      %p103 = scmp.eq.s32.totalorder %s23, 1
      %p104 = por %p102, %p103
      %p105 = scmp.ne.s32.totalorder %s96, %s97
      %p106 = scmp.eq.s32.totalorder %s23, 0
      %p107 = por %p105, %p106
      %p108 = scmp.ne.s32.totalorder %s96, %s97
      %p109 = scmp.eq.s32.totalorder %s24, 1
      %p110 = por %p108, %p109
      %p112 = scmp.ne.s32.totalorder %s97, %s111
      %p113 = scmp.eq.s32.totalorder %s24, 0
      %p114 = por %p112, %p113
      %s116 = sadd.s32 %s115, 1
      %p119 = scmp.eq.s32.totalorder %s18, 1
      %p120 = scmp.ne.s32.totalorder %s115, %s117
      %p121 = scmp.eq.s32.totalorder %s18, 0
      %p122 = por %p120, %p121
      %p123 = scmp.ne.s32.totalorder %s115, %s117
      %p124 = scmp.eq.s32.totalorder %s23, 1
      %p125 = por %p123, %p124
      %p126 = scmp.ne.s32.totalorder %s117, %s118
      %p127 = scmp.eq.s32.totalorder %s23, 0
      %p128 = por %p126, %p127
      %p129 = scmp.ne.s32.totalorder %s117, %s118
      %p130 = scmp.eq.s32.totalorder %s24, 1
      %p131 = por %p129, %p130
      %p133 = scmp.ne.s32.totalorder %s118, %s132
      %p134 = scmp.eq.s32.totalorder %s24, 0
      %p135 = por %p133, %p134
      %s137 = sadd.s32 %s136, 1
      %p140 = scmp.eq.s32.totalorder %s18, 1
      %p141 = scmp.ne.s32.totalorder %s136, %s138
      %p142 = scmp.eq.s32.totalorder %s18, 0
      %p143 = por %p141, %p142
      %p144 = scmp.ne.s32.totalorder %s136, %s138
      %p145 = scmp.eq.s32.totalorder %s23, 1
      %p146 = por %p144, %p145
      %p147 = scmp.ne.s32.totalorder %s138, %s139
      %p148 = scmp.eq.s32.totalorder %s23, 0
      %p149 = por %p147, %p148
      %p150 = scmp.ne.s32.totalorder %s138, %s139
      %p151 = scmp.eq.s32.totalorder %s24, 1
      %p152 = por %p150, %p151
      %p154 = scmp.ne.s32.totalorder %s139, %s153
      %p155 = scmp.eq.s32.totalorder %s24, 0
      %p156 = por %p154, %p155
      %s158 = sadd.s32 %s157, 1
      %p161 = scmp.eq.s32.totalorder %s18, 1
      %p162 = scmp.ne.s32.totalorder %s157, %s159
      %p163 = scmp.eq.s32.totalorder %s18, 0
      %p164 = por %p162, %p163
      %p165 = scmp.ne.s32.totalorder %s157, %s159
      %p166 = scmp.eq.s32.totalorder %s23, 1
      %p167 = por %p165, %p166
      %p168 = scmp.ne.s32.totalorder %s159, %s160
      %p169 = scmp.eq.s32.totalorder %s23, 0
      %p170 = por %p168, %p169
      %p171 = scmp.ne.s32.totalorder %s159, %s160
      %p172 = scmp.eq.s32.totalorder %s24, 1
      %p173 = por %p171, %p172
      %p175 = scmp.ne.s32.totalorder %s160, %s174
      %p176 = scmp.eq.s32.totalorder %s24, 0
      %p177 = por %p175, %p176
      %s179 = sadd.s32 %s178, 1
      %p182 = scmp.eq.s32.totalorder %s18, 1
      %p183 = scmp.ne.s32.totalorder %s178, %s180
      %p184 = scmp.eq.s32.totalorder %s18, 0
      %p185 = por %p183, %p184
      %p186 = scmp.ne.s32.totalorder %s178, %s180
      %p187 = scmp.eq.s32.totalorder %s23, 1
      %p188 = por %p186, %p187
      %p189 = scmp.ne.s32.totalorder %s180, %s181
      %p190 = scmp.eq.s32.totalorder %s23, 0
      %p191 = por %p189, %p190
      %p192 = scmp.ne.s32.totalorder %s180, %s181
      %p193 = scmp.eq.s32.totalorder %s24, 1
      %p194 = por %p192, %p193
      %p196 = scmp.ne.s32.totalorder %s181, %s195
      %p197 = scmp.eq.s32.totalorder %s24, 0
      %p198 = por %p196, %p197
      %s200 = sadd.s32 %s199, 1
      %p203 = scmp.eq.s32.totalorder %s18, 1
      %p204 = scmp.ne.s32.totalorder %s199, %s201
      %p205 = scmp.eq.s32.totalorder %s18, 0
      %p206 = por %p204, %p205
      %p207 = scmp.ne.s32.totalorder %s199, %s201
      %p208 = scmp.eq.s32.totalorder %s23, 1
      %p209 = por %p207, %p208
      %p210 = scmp.ne.s32.totalorder %s201, %s202
      %p211 = scmp.eq.s32.totalorder %s23, 0
      %p212 = por %p210, %p211
      %p213 = scmp.ne.s32.totalorder %s201, %s202
      %p214 = scmp.eq.s32.totalorder %s24, 1
      %p215 = por %p213, %p214
      %p217 = scmp.ne.s32.totalorder %s202, %s216
      %p218 = scmp.eq.s32.totalorder %s24, 0
      %p219 = por %p217, %p218
      %s220 = ssub.s32 %s18, %s25
      %p221 = scmp.eq.s32.totalorder %s220, 0
      %s223 = sadd.s32 %s222, 1
      %s224 = scalar_select %p221, %s222, %s223
      %p227 = pneg %p221
      %p228 = scmp.eq.s32.totalorder %s18, 1
      %p229 = por %p227, %p228
      %p230 = scmp.ne.s32.totalorder %s222, %s225
      %p231 = scmp.eq.s32.totalorder %s18, 0
      %p232 = por %p230, %p231
      %p233 = scmp.ne.s32.totalorder %s222, %s225
      %p234 = scmp.eq.s32.totalorder %s23, 1
      %p235 = por %p233, %p234
      %p236 = scmp.ne.s32.totalorder %s225, %s226
      %p237 = scmp.eq.s32.totalorder %s23, 0
      %p238 = por %p236, %p237
      %p239 = scmp.ne.s32.totalorder %s225, %s226
      %p240 = scmp.eq.s32.totalorder %s24, 1
      %p241 = por %p239, %p240
      %p243 = scmp.ne.s32.totalorder %s226, %s242
      %p244 = scmp.eq.s32.totalorder %s24, 0
      %p245 = por %p243, %p244
      %p246 = scmp.le.s32.totalorder 1, %s18
      %p247 = scmp.lt.s32.totalorder %s18, 3
      %p248 = pnand %p246, %p247
      %p249 = pneg %p248
      // Predicated region
      $region9: #{tpu_custom_call.1} parent=5 // pred_check
        _
      $region10: #{tpu_custom_call.1} parent=5 // pred_check_branch
        %251 = sbr.rel (%p248) target = $region12
      $region11: #{tpu_custom_call.1} parent=5 // pred_region
        %s252 = ssub.s32 %s18, 1
        // Predicated region
        $region13: #{tpu_custom_call.1} parent=11 // pred_check
          %p253 = pneg %p65
        $region14: #{tpu_custom_call.1} parent=11 // pred_check_branch
          %255 = sbr.rel (%p253) target = $region16
        $region15: #{tpu_custom_call.1} parent=11 // pred_region
          _
        $region16: #{tpu_custom_call.1} parent=11 // pred_fallthru
          _
        // Predicated region
        $region17: #{tpu_custom_call.1} parent=11 // pred_check
          %p256 = pneg %p86
        $region18: #{tpu_custom_call.1} parent=11 // pred_check_branch
          %258 = sbr.rel (%p256) target = $region20
        $region19: #{tpu_custom_call.1} parent=11 // pred_region
          _
        $region20: #{tpu_custom_call.1} parent=11 // pred_fallthru
          _
        // Predicated region
        $region21: #{tpu_custom_call.1} parent=11 // pred_check
          %p259 = pneg %p107
        $region22: #{tpu_custom_call.1} parent=11 // pred_check_branch
          %261 = sbr.rel (%p259) target = $region24
        $region23: #{tpu_custom_call.1} parent=11 // pred_region
          _
        $region24: #{tpu_custom_call.1} parent=11 // pred_fallthru
          _
        // Predicated region
        $region25: #{tpu_custom_call.1} parent=11 // pred_check
          %p262 = pneg %p128
        $region26: #{tpu_custom_call.1} parent=11 // pred_check_branch
          %264 = sbr.rel (%p262) target = $region28
        $region27: #{tpu_custom_call.1} parent=11 // pred_region
          _
        $region28: #{tpu_custom_call.1} parent=11 // pred_fallthru
          _
        // Predicated region
        $region29: #{tpu_custom_call.1} parent=11 // pred_check
          %p265 = pneg %p149
        $region30: #{tpu_custom_call.1} parent=11 // pred_check_branch
          %267 = sbr.rel (%p265) target = $region32
        $region31: #{tpu_custom_call.1} parent=11 // pred_region
          _
        $region32: #{tpu_custom_call.1} parent=11 // pred_fallthru
          _
        // Predicated region
        $region33: #{tpu_custom_call.1} parent=11 // pred_check
          %p268 = pneg %p170
        $region34: #{tpu_custom_call.1} parent=11 // pred_check_branch
          %270 = sbr.rel (%p268) target = $region36
        $region35: #{tpu_custom_call.1} parent=11 // pred_region
          _
        $region36: #{tpu_custom_call.1} parent=11 // pred_fallthru
          _
        // Predicated region
        $region37: #{tpu_custom_call.1} parent=11 // pred_check
          %p271 = pneg %p191
        $region38: #{tpu_custom_call.1} parent=11 // pred_check_branch
          %273 = sbr.rel (%p271) target = $region40
        $region39: #{tpu_custom_call.1} parent=11 // pred_region
          _
        $region40: #{tpu_custom_call.1} parent=11 // pred_fallthru
          _
        // Predicated region
        $region41: #{tpu_custom_call.1} parent=11 // pred_check
          %p274 = pneg %p212
        $region42: #{tpu_custom_call.1} parent=11 // pred_check_branch
          %276 = sbr.rel (%p274) target = $region44
        $region43: #{tpu_custom_call.1} parent=11 // pred_region
          _
        $region44: #{tpu_custom_call.1} parent=11 // pred_fallthru
          _
      $region12: #{tpu_custom_call.1} parent=5 // pred_fallthru
        _
      %p277 = scmp.lt.s32.totalorder %s18, 2
      // Predicated region
      $region45: #{tpu_custom_call.1} parent=5 // pred_check
        %p278 = pneg %p277
      $region46: #{tpu_custom_call.1} parent=5 // pred_check_branch
        %280 = sbr.rel (%p278) target = $region48
      $region47: #{tpu_custom_call.1} parent=5 // pred_region
        // Predicated region
        $region49: #{tpu_custom_call.1} parent=47 // pred_check
          %p281 = pneg %p38
        $region50: #{tpu_custom_call.1} parent=47 // pred_check_branch
          %283 = sbr.rel (%p281) target = $region52
        $region51: #{tpu_custom_call.1} parent=47 // pred_region
          %s284 = smul.u32 2, %s18
          %p285 = scmp.lt.s32.totalorder %s284, 3
          %s286 = scalar_select %p285, %s284, 3
          %s287 = smul.addr %s286, 2
          %s288 = scalar_lea.vmem %s0, %s287
          %s289 = smul.u32 2, %s18
        $region52: #{tpu_custom_call.1} parent=47 // pred_fallthru
          _
      $region48: #{tpu_custom_call.1} parent=5 // pred_fallthru
        _
      %p290 = scmp.le.s32.totalorder 1, %s18
      %p291 = scmp.lt.s32.totalorder %s18, 3
      %p292 = pnand %p290, %p291
      %p293 = pneg %p292
      // Predicated region
      $region53: #{tpu_custom_call.1} parent=5 // pred_check
        _
      $region54: #{tpu_custom_call.1} parent=5 // pred_check_branch
        %295 = sbr.rel (%p292) target = $region56
      $region55: #{tpu_custom_call.1} parent=5 // pred_region
        %s296 = ssub.s32 %s18, 1
        %s297 = smul.u32 2, %s23
        %p298 = scmp.lt.s32.totalorder %s297, 3
        %s299 = scalar_select %p298, %s297, 3
        %s300 = smul.addr %s299, 2
        %s301 = scalar_lea.vmem %s0, %s300
        %p302 = pneg %p44
        %p303 = pneg %p41
        %p304 = pneg %p65
        %p305 = pneg %p62
        %p306 = pneg %p86
        %p307 = pneg %p83
        %p308 = pneg %p107
        %p309 = pneg %p104
        %p310 = pneg %p128
        %p311 = pneg %p125
        %p312 = pneg %p149
        %p313 = pneg %p146
        %p314 = pneg %p170
        %p315 = pneg %p167
        %p316 = pneg %p191
        %p317 = pneg %p188
        %p318 = pneg %p212
        %p319 = pneg %p209
        %p320 = pneg %p238
        %p321 = pneg %p235
        %s322 = sand.u32 %s225, 1
        %s323 = scalar_lea.sflag [#allocation3], %s322
        %s324 = sand.u32 %s225, 1
        %s325 = smul.addr %s324, 16
        %s326 = scalar_lea.vmem [#allocation2], %s325
        %s327 = smul.u32 2, %s23
        %p328 = scmp.lt.s32.totalorder %s327, 3
        %s329 = scalar_select %p328, %s327, 3
        %s330 = smul.addr %s329, 2
        %s331 = scalar_lea.vmem %s0, %s330
        %s332 = smul.u32 2, %s23
        %s333 = smul.u32 2, %s23
        %v334 = vld [vmem:[%s331] sm:$0xf]
        %v335 = vmul.f32 %v334, 7.0
        %v336 = vlaneseq
        %v337 = vshrl.u32 %v336, 7
        %v338 = vadd.s32 %v337, 8
        %v339 = vadd.s32 %v337, 16
        %v340 = vadd.s32 %v337, 24
        %v341 = vadd.s32 %v337, 32
        %v342 = vadd.s32 %v337, 40
        %v343 = vadd.s32 %v337, 48
        %v344 = vadd.s32 %v337, 56
        %v345 = vshra.s32 %v337, 3
        %v346 = vshra.s32 %v338, 3
        %v347 = vshra.s32 %v339, 3
        %v348 = vshra.s32 %v340, 3
        %v349 = vshra.s32 %v341, 3
        %v350 = vshra.s32 %v342, 3
        %v351 = vshra.s32 %v343, 3
        %v352 = vshra.s32 %v344, 3
        %v353 = vcvt.s32.f32 %v345
        %v354 = vcvt.s32.f32 %v346
        %v355 = vcvt.s32.f32 %v347
        %v356 = vcvt.s32.f32 %v348
        %v357 = vcvt.s32.f32 %v349
        %v358 = vcvt.s32.f32 %v350
        %v359 = vcvt.s32.f32 %v351
        %v360 = vcvt.s32.f32 %v352
        %v361 = vand.u32 %v337, 7
        %v362 = vand.u32 %v338, 7
        %v363 = vand.u32 %v339, 7
        %v364 = vand.u32 %v340, 7
        %v365 = vand.u32 %v341, 7
        %v366 = vand.u32 %v342, 7
        %v367 = vand.u32 %v343, 7
        %v368 = vand.u32 %v344, 7
        %v369 = vcvt.s32.f32 %v361
        %v370 = vcvt.s32.f32 %v362
        %v371 = vcvt.s32.f32 %v363
        %v372 = vcvt.s32.f32 %v364
        %v373 = vcvt.s32.f32 %v365
        %v374 = vcvt.s32.f32 %v366
        %v375 = vcvt.s32.f32 %v367
        %v376 = vcvt.s32.f32 %v368
        %v378 = vlaneseq
        %v379 = vshrl.u32 %v378, 7
        %v380 = vsub.s32 0, %v379
        %v381 = vrot.slane %v335, %v380
        %v382 = vlaneseq
        %v383 = vshrl.u32 %v382, 7
        %v384 = vsub.s32 2, %v383
        %v385 = vrot.slane %v335, %v384
        %v388 = vlaneseq
        %v389 = vshrl.u32 %v388, 7
        %v390 = vsub.s32 0, %v389
        %v391 = vrot.slane %v381, %v390
        %v392 = vlaneseq
        %v393 = vshrl.u32 %v392, 7
        %v394 = vsub.s32 0, %v393
        %v395 = vrot.slane %v385, %v394
        %v396 = vsub.f32 %v353, %v391
        %v397 = vsub.f32 %v353, %v395
        %v398 = vsub.f32 %v354, %v391
        %v399 = vsub.f32 %v354, %v395
        %v400 = vsub.f32 %v355, %v391
        %v401 = vsub.f32 %v355, %v395
        %v402 = vsub.f32 %v356, %v391
        %v403 = vsub.f32 %v356, %v395
        %v404 = vsub.f32 %v357, %v391
        %v405 = vsub.f32 %v357, %v395
        %v406 = vsub.f32 %v358, %v391
        %v407 = vsub.f32 %v358, %v395
        %v408 = vsub.f32 %v359, %v391
        %v409 = vsub.f32 %v359, %v395
        %v410 = vsub.f32 %v360, %v391
        %v411 = vsub.f32 %v360, %v395
        %v412 = vand.u32 2147483647, %v396
        %v413 = vand.u32 2147483647, %v397
        %v414 = vand.u32 2147483647, %v398
        %v415 = vand.u32 2147483647, %v399
        %v416 = vand.u32 2147483647, %v400
        %v417 = vand.u32 2147483647, %v401
        %v418 = vand.u32 2147483647, %v402
        %v419 = vand.u32 2147483647, %v403
        %v420 = vand.u32 2147483647, %v404
        %v421 = vand.u32 2147483647, %v405
        %v422 = vand.u32 2147483647, %v406
        %v423 = vand.u32 2147483647, %v407
        %v424 = vand.u32 2147483647, %v408
        %v425 = vand.u32 2147483647, %v409
        %v426 = vand.u32 2147483647, %v410
        %v427 = vand.u32 2147483647, %v411
        %v428 = vsub.f32 1.0, %v412
        %v429 = vsub.f32 1.0, %v413
        %v430 = vsub.f32 1.0, %v414
        %v431 = vsub.f32 1.0, %v415
        %v432 = vsub.f32 1.0, %v416
        %v433 = vsub.f32 1.0, %v417
        %v434 = vsub.f32 1.0, %v418
        %v435 = vsub.f32 1.0, %v419
        %v436 = vsub.f32 1.0, %v420
        %v437 = vsub.f32 1.0, %v421
        %v438 = vsub.f32 1.0, %v422
        %v439 = vsub.f32 1.0, %v423
        %v440 = vsub.f32 1.0, %v424
        %v441 = vsub.f32 1.0, %v425
        %v442 = vsub.f32 1.0, %v426
        %v443 = vsub.f32 1.0, %v427
        %v444 = vmax.f32 %v428, 0.0
        %v445 = vmax.f32 %v429, 0.0
        %v446 = vmax.f32 %v430, 0.0
        %v447 = vmax.f32 %v431, 0.0
        %v448 = vmax.f32 %v432, 0.0
        %v449 = vmax.f32 %v433, 0.0
        %v450 = vmax.f32 %v434, 0.0
        %v451 = vmax.f32 %v435, 0.0
        %v452 = vmax.f32 %v436, 0.0
        %v453 = vmax.f32 %v437, 0.0
        %v454 = vmax.f32 %v438, 0.0
        %v455 = vmax.f32 %v439, 0.0
        %v456 = vmax.f32 %v440, 0.0
        %v457 = vmax.f32 %v441, 0.0
        %v458 = vmax.f32 %v442, 0.0
        %v459 = vmax.f32 %v443, 0.0
        %v460 = vlaneseq
        %v461 = vshrl.u32 %v460, 7
        %v462 = vsub.s32 1, %v461
        %v463 = vrot.slane %v335, %v462
        %v464 = vlaneseq
        %v465 = vshrl.u32 %v464, 7
        %v466 = vsub.s32 3, %v465
        %v467 = vrot.slane %v335, %v466
        %v470 = vlaneseq
        %v471 = vshrl.u32 %v470, 7
        %v472 = vsub.s32 1, %v471
        %v473 = vrot.slane %v463, %v472
        %v474 = vlaneseq
        %v475 = vshrl.u32 %v474, 7
        %v476 = vsub.s32 1, %v475
        %v477 = vrot.slane %v467, %v476
        %v478 = vsub.f32 %v369, %v473
        %v479 = vsub.f32 %v369, %v477
        %v480 = vsub.f32 %v370, %v473
        %v481 = vsub.f32 %v370, %v477
        %v482 = vsub.f32 %v371, %v473
        %v483 = vsub.f32 %v371, %v477
        %v484 = vsub.f32 %v372, %v473
        %v485 = vsub.f32 %v372, %v477
        %v486 = vsub.f32 %v373, %v473
        %v487 = vsub.f32 %v373, %v477
        %v488 = vsub.f32 %v374, %v473
        %v489 = vsub.f32 %v374, %v477
        %v490 = vsub.f32 %v375, %v473
        %v491 = vsub.f32 %v375, %v477
        %v492 = vsub.f32 %v376, %v473
        %v493 = vsub.f32 %v376, %v477
        %v494 = vand.u32 2147483647, %v478
        %v495 = vand.u32 2147483647, %v479
        %v496 = vand.u32 2147483647, %v480
        %v497 = vand.u32 2147483647, %v481
        %v498 = vand.u32 2147483647, %v482
        %v499 = vand.u32 2147483647, %v483
        %v500 = vand.u32 2147483647, %v484
        %v501 = vand.u32 2147483647, %v485
        %v502 = vand.u32 2147483647, %v486
        %v503 = vand.u32 2147483647, %v487
        %v504 = vand.u32 2147483647, %v488
        %v505 = vand.u32 2147483647, %v489
        %v506 = vand.u32 2147483647, %v490
        %v507 = vand.u32 2147483647, %v491
        %v508 = vand.u32 2147483647, %v492
        %v509 = vand.u32 2147483647, %v493
        %v510 = vsub.f32 1.0, %v494
        %v511 = vsub.f32 1.0, %v495
        %v512 = vsub.f32 1.0, %v496
        %v513 = vsub.f32 1.0, %v497
        %v514 = vsub.f32 1.0, %v498
        %v515 = vsub.f32 1.0, %v499
        %v516 = vsub.f32 1.0, %v500
        %v517 = vsub.f32 1.0, %v501
        %v518 = vsub.f32 1.0, %v502
        %v519 = vsub.f32 1.0, %v503
        %v520 = vsub.f32 1.0, %v504
        %v521 = vsub.f32 1.0, %v505
        %v522 = vsub.f32 1.0, %v506
        %v523 = vsub.f32 1.0, %v507
        %v524 = vsub.f32 1.0, %v508
        %v525 = vsub.f32 1.0, %v509
        %v526 = vmax.f32 %v510, 0.0
        %v527 = vmax.f32 %v511, 0.0
        %v528 = vmax.f32 %v512, 0.0
        %v529 = vmax.f32 %v513, 0.0
        %v530 = vmax.f32 %v514, 0.0
        %v531 = vmax.f32 %v515, 0.0
        %v532 = vmax.f32 %v516, 0.0
        %v533 = vmax.f32 %v517, 0.0
        %v534 = vmax.f32 %v518, 0.0
        %v535 = vmax.f32 %v519, 0.0
        %v536 = vmax.f32 %v520, 0.0
        %v537 = vmax.f32 %v521, 0.0
        %v538 = vmax.f32 %v522, 0.0
        %v539 = vmax.f32 %v523, 0.0
        %v540 = vmax.f32 %v524, 0.0
        %v541 = vmax.f32 %v525, 0.0
        %v542 = vmul.f32 %v444, %v526
        %v543 = vmul.f32 %v445, %v527
        %v544 = vmul.f32 %v446, %v528
        %v545 = vmul.f32 %v447, %v529
        %v546 = vmul.f32 %v448, %v530
        %v547 = vmul.f32 %v449, %v531
        %v548 = vmul.f32 %v450, %v532
        %v549 = vmul.f32 %v451, %v533
        %v550 = vmul.f32 %v452, %v534
        %v551 = vmul.f32 %v453, %v535
        %v552 = vmul.f32 %v454, %v536
        %v553 = vmul.f32 %v455, %v537
        %v554 = vmul.f32 %v456, %v538
        %v555 = vmul.f32 %v457, %v539
        %v556 = vmul.f32 %v458, %v540
        %v557 = vmul.f32 %v459, %v541
        %v558 = vld [vmem:[%s1] sm:$0xff]
        %vm559 = vcmask 523264
        %v561 = vsel %vm559, %v558, 0
        %563 = vmatprep.subr.mxu0 %v543
        %564 = vmatpush1.msra.mxu0 %v542
        %565 = vmatprep.subr.mxu0 %v545
        %566 = vmatpush1.msra.mxu0 %v544
        %567 = vmatprep.subr.mxu0 %v547
        %568 = vmatpush1.msra.mxu0 %v546
        %569 = vmatprep.subr.mxu0 %v549
        %570 = vmatpush1.msra.mxu0 %v548
        %571 = vmatprep.subr.mxu0 %v551
        %572 = vmatpush1.msra.mxu0 %v550
        %573 = vmatprep.subr.mxu0 %v553
        %574 = vmatpush1.msra.mxu0 %v552
        %575 = vmatprep.subr.mxu0 %v555
        %576 = vmatpush1.msra.mxu0 %v554
        %577 = vmatprep.subr.mxu0 %v557
        %578 = vmatpush1.msra.mxu0 %v556
        %579 = vmatprep.subr.mxu0 0.0
        %580 = vmatpush1.msra.mxu0 0.0
        %581 = vmatprep.subr.mxu0 0.0
        %582 = vmatpush1.msra.mxu0 0.0
        %583 = vmatprep.subr.mxu0 0.0
        %584 = vmatpush1.msra.mxu0 0.0
        %585 = vmatprep.subr.mxu0 0.0
        %586 = vmatpush1.msra.mxu0 0.0
        %587 = vmatprep.subr.mxu0 0.0
        %588 = vmatpush1.msra.mxu0 0.0
        %589 = vmatprep.subr.mxu0 0.0
        %590 = vmatpush1.msra.mxu0 0.0
        %591 = vmatprep.subr.mxu0 0.0
        %592 = vmatpush1.msra.mxu0 0.0
        %593 = vmatprep.subr.mxu0 0.0
        %594 = vmatpush1.msra.mxu0 0.0
        %595 = vmatprep.subr.mxu0 0.0
        %596 = vmatpush1.msra.mxu0 0.0
        %597 = vmatprep.subr.mxu0 0.0
        %598 = vmatpush1.msra.mxu0 0.0
        %599 = vmatprep.subr.mxu0 0.0
        %600 = vmatpush1.msra.mxu0 0.0
        %601 = vmatprep.subr.mxu0 0.0
        %602 = vmatpush1.msra.mxu0 0.0
        %603 = vmatprep.subr.mxu0 0.0
        %604 = vmatpush1.msra.mxu0 0.0
        %605 = vmatprep.subr.mxu0 0.0
        %606 = vmatpush1.msra.mxu0 0.0
        %607 = vmatprep.subr.mxu0 0.0
        %608 = vmatpush1.msra.mxu0 0.0
        %609 = vmatprep.subr.mxu0 0.0
        %610 = vmatpush1.msra.mxu0 0.0
        %611 = vmatprep.subr.mxu0 0.0
        %612 = vmatpush1.msra.mxu0 0.0
        %613 = vmatprep.subr.mxu0 0.0
        %614 = vmatpush1.msra.mxu0 0.0
        %615 = vmatprep.subr.mxu0 0.0
        %616 = vmatpush1.msra.mxu0 0.0
        %617 = vmatprep.subr.mxu0 0.0
        %618 = vmatpush1.msra.mxu0 0.0
        %619 = vmatprep.subr.mxu0 0.0
        %620 = vmatpush1.msra.mxu0 0.0
        %621 = vmatprep.subr.mxu0 0.0
        %622 = vmatpush1.msra.mxu0 0.0
        %623 = vmatprep.subr.mxu0 0.0
        %624 = vmatpush1.msra.mxu0 0.0
        %625 = vmatprep.subr.mxu0 0.0
        %626 = vmatpush1.msra.mxu0 0.0
        %627 = vmatprep.mubr.f32.mxu0 0.0
        %628 = vmatmul.mubr.f32.gmra.mrb[0].mxu0 %v561
        %v629 = vpop.f32.mrb[0].mxu0
        %v630 = vadd.f32 0.0, %v629
        %v631 = vpop.f32.mrb[0].mxu0
        %v632 = vadd.f32 0.0, %v631
        %633 = vdwg.mxu0
        %v634 = vmul.f32 %v334, 15.0
        %v635 = vadd.s32 %v337, 64
        %v636 = vadd.s32 %v337, 72
        %v637 = vadd.s32 %v337, 80
        %v638 = vadd.s32 %v337, 88
        %v639 = vadd.s32 %v337, 96
        %v640 = vadd.s32 %v337, 104
        %v641 = vadd.s32 %v337, 112
        %v642 = vadd.s32 %v337, 120
        %v643 = vadd.s32 %v337, 128
        %v644 = vadd.s32 %v337, 136
        %v645 = vadd.s32 %v337, 144
        %v646 = vadd.s32 %v337, 152
        %v647 = vadd.s32 %v337, 160
        %v648 = vadd.s32 %v337, 168
        %v649 = vadd.s32 %v337, 176
        %v650 = vadd.s32 %v337, 184
        %v651 = vadd.s32 %v337, 192
        %v652 = vadd.s32 %v337, 200
        %v653 = vadd.s32 %v337, 208
        %v654 = vadd.s32 %v337, 216
        %v655 = vadd.s32 %v337, 224
        %v656 = vadd.s32 %v337, 232
        %v657 = vadd.s32 %v337, 240
        %v658 = vadd.s32 %v337, 248
        %v659 = vshra.s32 %v337, 4
        %v660 = vshra.s32 %v338, 4
        %v661 = vshra.s32 %v339, 4
        %v662 = vshra.s32 %v340, 4
        %v663 = vshra.s32 %v341, 4
        %v664 = vshra.s32 %v342, 4
        %v665 = vshra.s32 %v343, 4
        %v666 = vshra.s32 %v344, 4
        %v667 = vshra.s32 %v635, 4
        %v668 = vshra.s32 %v636, 4
        %v669 = vshra.s32 %v637, 4
        %v670 = vshra.s32 %v638, 4
        %v671 = vshra.s32 %v639, 4
        %v672 = vshra.s32 %v640, 4
        %v673 = vshra.s32 %v641, 4
        %v674 = vshra.s32 %v642, 4
        %v675 = vshra.s32 %v643, 4
        %v676 = vshra.s32 %v644, 4
        %v677 = vshra.s32 %v645, 4
        %v678 = vshra.s32 %v646, 4
        %v679 = vshra.s32 %v647, 4
        %v680 = vshra.s32 %v648, 4
        %v681 = vshra.s32 %v649, 4
        %v682 = vshra.s32 %v650, 4
        %v683 = vshra.s32 %v651, 4
        %v684 = vshra.s32 %v652, 4
        %v685 = vshra.s32 %v653, 4
        %v686 = vshra.s32 %v654, 4
        %v687 = vshra.s32 %v655, 4
        %v688 = vshra.s32 %v656, 4
        %v689 = vshra.s32 %v657, 4
        %v690 = vshra.s32 %v658, 4
        %v691 = vcvt.s32.f32 %v659
        %v692 = vcvt.s32.f32 %v660
        %v693 = vcvt.s32.f32 %v661
        %v694 = vcvt.s32.f32 %v662
        %v695 = vcvt.s32.f32 %v663
        %v696 = vcvt.s32.f32 %v664
        %v697 = vcvt.s32.f32 %v665
        %v698 = vcvt.s32.f32 %v666
        %v699 = vcvt.s32.f32 %v667
        %v700 = vcvt.s32.f32 %v668
        %v701 = vcvt.s32.f32 %v669
        %v702 = vcvt.s32.f32 %v670
        %v703 = vcvt.s32.f32 %v671
        %v704 = vcvt.s32.f32 %v672
        %v705 = vcvt.s32.f32 %v673
        %v706 = vcvt.s32.f32 %v674
        %v707 = vcvt.s32.f32 %v675
        %v708 = vcvt.s32.f32 %v676
        %v709 = vcvt.s32.f32 %v677
        %v710 = vcvt.s32.f32 %v678
        %v711 = vcvt.s32.f32 %v679
        %v712 = vcvt.s32.f32 %v680
        %v713 = vcvt.s32.f32 %v681
        %v714 = vcvt.s32.f32 %v682
        %v715 = vcvt.s32.f32 %v683
        %v716 = vcvt.s32.f32 %v684
        %v717 = vcvt.s32.f32 %v685
        %v718 = vcvt.s32.f32 %v686
        %v719 = vcvt.s32.f32 %v687
        %v720 = vcvt.s32.f32 %v688
        %v721 = vcvt.s32.f32 %v689
        %v722 = vcvt.s32.f32 %v690
        %v723 = vand.u32 %v337, 15
        %v724 = vand.u32 %v338, 15
        %v725 = vand.u32 %v339, 15
        %v726 = vand.u32 %v340, 15
        %v727 = vand.u32 %v341, 15
        %v728 = vand.u32 %v342, 15
        %v729 = vand.u32 %v343, 15
        %v730 = vand.u32 %v344, 15
        %v731 = vand.u32 %v635, 15
        %v732 = vand.u32 %v636, 15
        %v733 = vand.u32 %v637, 15
        %v734 = vand.u32 %v638, 15
        %v735 = vand.u32 %v639, 15
        %v736 = vand.u32 %v640, 15
        %v737 = vand.u32 %v641, 15
        %v738 = vand.u32 %v642, 15
        %v739 = vand.u32 %v643, 15
        %v740 = vand.u32 %v644, 15
        %v741 = vand.u32 %v645, 15
        %v742 = vand.u32 %v646, 15
        %v743 = vand.u32 %v647, 15
        %v744 = vand.u32 %v648, 15
        %v745 = vand.u32 %v649, 15
        %v746 = vand.u32 %v650, 15
        %v747 = vand.u32 %v651, 15
        %v748 = vand.u32 %v652, 15
        %v749 = vand.u32 %v653, 15
        %v750 = vand.u32 %v654, 15
        %v751 = vand.u32 %v655, 15
        %v752 = vand.u32 %v656, 15
        %v753 = vand.u32 %v657, 15
        %v754 = vand.u32 %v658, 15
        %v755 = vcvt.s32.f32 %v723
        %v756 = vcvt.s32.f32 %v724
        %v757 = vcvt.s32.f32 %v725
        %v758 = vcvt.s32.f32 %v726
        %v759 = vcvt.s32.f32 %v727
        %v760 = vcvt.s32.f32 %v728
        %v761 = vcvt.s32.f32 %v729
        %v762 = vcvt.s32.f32 %v730
        %v763 = vcvt.s32.f32 %v731
        %v764 = vcvt.s32.f32 %v732
        %v765 = vcvt.s32.f32 %v733
        %v766 = vcvt.s32.f32 %v734
        %v767 = vcvt.s32.f32 %v735
        %v768 = vcvt.s32.f32 %v736
        %v769 = vcvt.s32.f32 %v737
        %v770 = vcvt.s32.f32 %v738
        %v771 = vcvt.s32.f32 %v739
        %v772 = vcvt.s32.f32 %v740
        %v773 = vcvt.s32.f32 %v741
        %v774 = vcvt.s32.f32 %v742
        %v775 = vcvt.s32.f32 %v743
        %v776 = vcvt.s32.f32 %v744
        %v777 = vcvt.s32.f32 %v745
        %v778 = vcvt.s32.f32 %v746
        %v779 = vcvt.s32.f32 %v747
        %v780 = vcvt.s32.f32 %v748
        %v781 = vcvt.s32.f32 %v749
        %v782 = vcvt.s32.f32 %v750
        %v783 = vcvt.s32.f32 %v751
        %v784 = vcvt.s32.f32 %v752
        %v785 = vcvt.s32.f32 %v753
        %v786 = vcvt.s32.f32 %v754
        %v788 = vlaneseq
        %v789 = vshrl.u32 %v788, 7
        %v790 = vsub.s32 0, %v789
        %v791 = vrot.slane %v634, %v790
        %v792 = vlaneseq
        %v793 = vshrl.u32 %v792, 7
        %v794 = vsub.s32 2, %v793
        %v795 = vrot.slane %v634, %v794
        %v798 = vlaneseq
        %v799 = vshrl.u32 %v798, 7
        %v800 = vsub.s32 0, %v799
        %v801 = vrot.slane %v791, %v800
        %v802 = vlaneseq
        %v803 = vshrl.u32 %v802, 7
        %v804 = vsub.s32 0, %v803
        %v805 = vrot.slane %v795, %v804
        %v806 = vsub.f32 %v691, %v801
        %v807 = vsub.f32 %v691, %v805
        %v808 = vsub.f32 %v692, %v801
        %v809 = vsub.f32 %v692, %v805
        %v810 = vsub.f32 %v693, %v801
        %v811 = vsub.f32 %v693, %v805
        %v812 = vsub.f32 %v694, %v801
        %v813 = vsub.f32 %v694, %v805
        %v814 = vsub.f32 %v695, %v801
        %v815 = vsub.f32 %v695, %v805
        %v816 = vsub.f32 %v696, %v801
        %v817 = vsub.f32 %v696, %v805
        %v818 = vsub.f32 %v697, %v801
        %v819 = vsub.f32 %v697, %v805
        %v820 = vsub.f32 %v698, %v801
        %v821 = vsub.f32 %v698, %v805
        %v822 = vsub.f32 %v699, %v801
        %v823 = vsub.f32 %v699, %v805
        %v824 = vsub.f32 %v700, %v801
        %v825 = vsub.f32 %v700, %v805
        %v826 = vsub.f32 %v701, %v801
        %v827 = vsub.f32 %v701, %v805
        %v828 = vsub.f32 %v702, %v801
        %v829 = vsub.f32 %v702, %v805
        %v830 = vsub.f32 %v703, %v801
        %v831 = vsub.f32 %v703, %v805
        %v832 = vsub.f32 %v704, %v801
        %v833 = vsub.f32 %v704, %v805
        %v834 = vsub.f32 %v705, %v801
        %v835 = vsub.f32 %v705, %v805
        %v836 = vsub.f32 %v706, %v801
        %v837 = vsub.f32 %v706, %v805
        %v838 = vsub.f32 %v707, %v801
        %v839 = vsub.f32 %v707, %v805
        %v840 = vsub.f32 %v708, %v801
        %v841 = vsub.f32 %v708, %v805
        %v842 = vsub.f32 %v709, %v801
        %v843 = vsub.f32 %v709, %v805
        %v844 = vsub.f32 %v710, %v801
        %v845 = vsub.f32 %v710, %v805
        %v846 = vsub.f32 %v711, %v801
        %v847 = vsub.f32 %v711, %v805
        %v848 = vsub.f32 %v712, %v801
        %v849 = vsub.f32 %v712, %v805
        %v850 = vsub.f32 %v713, %v801
        %v851 = vsub.f32 %v713, %v805
        %v852 = vsub.f32 %v714, %v801
        %v853 = vsub.f32 %v714, %v805
        %v854 = vsub.f32 %v715, %v801
        %v855 = vsub.f32 %v715, %v805
        %v856 = vsub.f32 %v716, %v801
        %v857 = vsub.f32 %v716, %v805
        %v858 = vsub.f32 %v717, %v801
        %v859 = vsub.f32 %v717, %v805
        %v860 = vsub.f32 %v718, %v801
        %v861 = vsub.f32 %v718, %v805
        %v862 = vsub.f32 %v719, %v801
        %v863 = vsub.f32 %v719, %v805
        %v864 = vsub.f32 %v720, %v801
        %v865 = vsub.f32 %v720, %v805
        %v866 = vsub.f32 %v721, %v801
        %v867 = vsub.f32 %v721, %v805
        %v868 = vsub.f32 %v722, %v801
        %v869 = vsub.f32 %v722, %v805
        %v870 = vand.u32 2147483647, %v806
        %v871 = vand.u32 2147483647, %v807
        %v872 = vand.u32 2147483647, %v808
        %v873 = vand.u32 2147483647, %v809
        %v874 = vand.u32 2147483647, %v810
        %v875 = vand.u32 2147483647, %v811
        %v876 = vand.u32 2147483647, %v812
        %v877 = vand.u32 2147483647, %v813
        %v878 = vand.u32 2147483647, %v814
        %v879 = vand.u32 2147483647, %v815
        %v880 = vand.u32 2147483647, %v816
        %v881 = vand.u32 2147483647, %v817
        %v882 = vand.u32 2147483647, %v818
        %v883 = vand.u32 2147483647, %v819
        %v884 = vand.u32 2147483647, %v820
        %v885 = vand.u32 2147483647, %v821
        %v886 = vand.u32 2147483647, %v822
        %v887 = vand.u32 2147483647, %v823
        %v888 = vand.u32 2147483647, %v824
        %v889 = vand.u32 2147483647, %v825
        %v890 = vand.u32 2147483647, %v826
        %v891 = vand.u32 2147483647, %v827
        %v892 = vand.u32 2147483647, %v828
        %v893 = vand.u32 2147483647, %v829
        %v894 = vand.u32 2147483647, %v830
        %v895 = vand.u32 2147483647, %v831
        %v896 = vand.u32 2147483647, %v832
        %v897 = vand.u32 2147483647, %v833
        %v898 = vand.u32 2147483647, %v834
        %v899 = vand.u32 2147483647, %v835
        %v900 = vand.u32 2147483647, %v836
        %v901 = vand.u32 2147483647, %v837
        %v902 = vand.u32 2147483647, %v838
        %v903 = vand.u32 2147483647, %v839
        %v904 = vand.u32 2147483647, %v840
        %v905 = vand.u32 2147483647, %v841
        %v906 = vand.u32 2147483647, %v842
        %v907 = vand.u32 2147483647, %v843
        %v908 = vand.u32 2147483647, %v844
        %v909 = vand.u32 2147483647, %v845
        %v910 = vand.u32 2147483647, %v846
        %v911 = vand.u32 2147483647, %v847
        %v912 = vand.u32 2147483647, %v848
        %v913 = vand.u32 2147483647, %v849
        %v914 = vand.u32 2147483647, %v850
        %v915 = vand.u32 2147483647, %v851
        %v916 = vand.u32 2147483647, %v852
        %v917 = vand.u32 2147483647, %v853
        %v918 = vand.u32 2147483647, %v854
        %v919 = vand.u32 2147483647, %v855
        %v920 = vand.u32 2147483647, %v856
        %v921 = vand.u32 2147483647, %v857
        %v922 = vand.u32 2147483647, %v858
        %v923 = vand.u32 2147483647, %v859
        %v924 = vand.u32 2147483647, %v860
        %v925 = vand.u32 2147483647, %v861
        %v926 = vand.u32 2147483647, %v862
        %v927 = vand.u32 2147483647, %v863
        %v928 = vand.u32 2147483647, %v864
        %v929 = vand.u32 2147483647, %v865
        %v930 = vand.u32 2147483647, %v866
        %v931 = vand.u32 2147483647, %v867
        %v932 = vand.u32 2147483647, %v868
        %v933 = vand.u32 2147483647, %v869
        %v934 = vsub.f32 1.0, %v870
        %v935 = vsub.f32 1.0, %v871
        %v936 = vsub.f32 1.0, %v872
        %v937 = vsub.f32 1.0, %v873
        %v938 = vsub.f32 1.0, %v874
        %v939 = vsub.f32 1.0, %v875
        %v940 = vsub.f32 1.0, %v876
        %v941 = vsub.f32 1.0, %v877
        %v942 = vsub.f32 1.0, %v878
        %v943 = vsub.f32 1.0, %v879
        %v944 = vsub.f32 1.0, %v880
        %v945 = vsub.f32 1.0, %v881
        %v946 = vsub.f32 1.0, %v882
        %v947 = vsub.f32 1.0, %v883
        %v948 = vsub.f32 1.0, %v884
        %v949 = vsub.f32 1.0, %v885
        %v950 = vsub.f32 1.0, %v886
        %v951 = vsub.f32 1.0, %v887
        %v952 = vsub.f32 1.0, %v888
        %v953 = vsub.f32 1.0, %v889
        %v954 = vsub.f32 1.0, %v890
        %v955 = vsub.f32 1.0, %v891
        %v956 = vsub.f32 1.0, %v892
        %v957 = vsub.f32 1.0, %v893
        %v958 = vsub.f32 1.0, %v894
        %v959 = vsub.f32 1.0, %v895
        %v960 = vsub.f32 1.0, %v896
        %v961 = vsub.f32 1.0, %v897
        %v962 = vsub.f32 1.0, %v898
        %v963 = vsub.f32 1.0, %v899
        %v964 = vsub.f32 1.0, %v900
        %v965 = vsub.f32 1.0, %v901
        %v966 = vsub.f32 1.0, %v902
        %v967 = vsub.f32 1.0, %v903
        %v968 = vsub.f32 1.0, %v904
        %v969 = vsub.f32 1.0, %v905
        %v970 = vsub.f32 1.0, %v906
        %v971 = vsub.f32 1.0, %v907
        %v972 = vsub.f32 1.0, %v908
        %v973 = vsub.f32 1.0, %v909
        %v974 = vsub.f32 1.0, %v910
        %v975 = vsub.f32 1.0, %v911
        %v976 = vsub.f32 1.0, %v912
        %v977 = vsub.f32 1.0, %v913
        %v978 = vsub.f32 1.0, %v914
        %v979 = vsub.f32 1.0, %v915
        %v980 = vsub.f32 1.0, %v916
        %v981 = vsub.f32 1.0, %v917
        %v982 = vsub.f32 1.0, %v918
        %v983 = vsub.f32 1.0, %v919
        %v984 = vsub.f32 1.0, %v920
        %v985 = vsub.f32 1.0, %v921
        %v986 = vsub.f32 1.0, %v922
        %v987 = vsub.f32 1.0, %v923
        %v988 = vsub.f32 1.0, %v924
        %v989 = vsub.f32 1.0, %v925
        %v990 = vsub.f32 1.0, %v926
        %v991 = vsub.f32 1.0, %v927
        %v992 = vsub.f32 1.0, %v928
        %v993 = vsub.f32 1.0, %v929
        %v994 = vsub.f32 1.0, %v930
        %v995 = vsub.f32 1.0, %v931
        %v996 = vsub.f32 1.0, %v932
        %v997 = vsub.f32 1.0, %v933
        %v998 = vmax.f32 %v934, 0.0
        %v999 = vmax.f32 %v935, 0.0
        %v1000 = vmax.f32 %v936, 0.0
        %v1001 = vmax.f32 %v937, 0.0
        %v1002 = vmax.f32 %v938, 0.0
        %v1003 = vmax.f32 %v939, 0.0
        %v1004 = vmax.f32 %v940, 0.0
        %v1005 = vmax.f32 %v941, 0.0
        %v1006 = vmax.f32 %v942, 0.0
        %v1007 = vmax.f32 %v943, 0.0
        %v1008 = vmax.f32 %v944, 0.0
        %v1009 = vmax.f32 %v945, 0.0
        %v1010 = vmax.f32 %v946, 0.0
        %v1011 = vmax.f32 %v947, 0.0
        %v1012 = vmax.f32 %v948, 0.0
        %v1013 = vmax.f32 %v949, 0.0
        %v1014 = vmax.f32 %v950, 0.0
        %v1015 = vmax.f32 %v951, 0.0
        %v1016 = vmax.f32 %v952, 0.0
        %v1017 = vmax.f32 %v953, 0.0
        %v1018 = vmax.f32 %v954, 0.0
        %v1019 = vmax.f32 %v955, 0.0
        %v1020 = vmax.f32 %v956, 0.0
        %v1021 = vmax.f32 %v957, 0.0
        %v1022 = vmax.f32 %v958, 0.0
        %v1023 = vmax.f32 %v959, 0.0
        %v1024 = vmax.f32 %v960, 0.0
        %v1025 = vmax.f32 %v961, 0.0
        %v1026 = vmax.f32 %v962, 0.0
        %v1027 = vmax.f32 %v963, 0.0
        %v1028 = vmax.f32 %v964, 0.0
        %v1029 = vmax.f32 %v965, 0.0
        %v1030 = vmax.f32 %v966, 0.0
        %v1031 = vmax.f32 %v967, 0.0
        %v1032 = vmax.f32 %v968, 0.0
        %v1033 = vmax.f32 %v969, 0.0
        %v1034 = vmax.f32 %v970, 0.0
        %v1035 = vmax.f32 %v971, 0.0
        %v1036 = vmax.f32 %v972, 0.0
        %v1037 = vmax.f32 %v973, 0.0
        %v1038 = vmax.f32 %v974, 0.0
        %v1039 = vmax.f32 %v975, 0.0
        %v1040 = vmax.f32 %v976, 0.0
        %v1041 = vmax.f32 %v977, 0.0
        %v1042 = vmax.f32 %v978, 0.0
        %v1043 = vmax.f32 %v979, 0.0
        %v1044 = vmax.f32 %v980, 0.0
        %v1045 = vmax.f32 %v981, 0.0
        %v1046 = vmax.f32 %v982, 0.0
        %v1047 = vmax.f32 %v983, 0.0
        %v1048 = vmax.f32 %v984, 0.0
        %v1049 = vmax.f32 %v985, 0.0
        %v1050 = vmax.f32 %v986, 0.0
        %v1051 = vmax.f32 %v987, 0.0
        %v1052 = vmax.f32 %v988, 0.0
        %v1053 = vmax.f32 %v989, 0.0
        %v1054 = vmax.f32 %v990, 0.0
        %v1055 = vmax.f32 %v991, 0.0
        %v1056 = vmax.f32 %v992, 0.0
        %v1057 = vmax.f32 %v993, 0.0
        %v1058 = vmax.f32 %v994, 0.0
        %v1059 = vmax.f32 %v995, 0.0
        %v1060 = vmax.f32 %v996, 0.0
        %v1061 = vmax.f32 %v997, 0.0
        %v1062 = vlaneseq
        %v1063 = vshrl.u32 %v1062, 7
        %v1064 = vsub.s32 1, %v1063
        %v1065 = vrot.slane %v634, %v1064
        %v1066 = vlaneseq
        %v1067 = vshrl.u32 %v1066, 7
        %v1068 = vsub.s32 3, %v1067
        %v1069 = vrot.slane %v634, %v1068
        %v1072 = vlaneseq
        %v1073 = vshrl.u32 %v1072, 7
        %v1074 = vsub.s32 1, %v1073
        %v1075 = vrot.slane %v1065, %v1074
        %v1076 = vlaneseq
        %v1077 = vshrl.u32 %v1076, 7
        %v1078 = vsub.s32 1, %v1077
        %v1079 = vrot.slane %v1069, %v1078
        %v1080 = vsub.f32 %v755, %v1075
        %v1081 = vsub.f32 %v755, %v1079
        %v1082 = vsub.f32 %v756, %v1075
        %v1083 = vsub.f32 %v756, %v1079
        %v1084 = vsub.f32 %v757, %v1075
        %v1085 = vsub.f32 %v757, %v1079
        %v1086 = vsub.f32 %v758, %v1075
        %v1087 = vsub.f32 %v758, %v1079
        %v1088 = vsub.f32 %v759, %v1075
        %v1089 = vsub.f32 %v759, %v1079
        %v1090 = vsub.f32 %v760, %v1075
        %v1091 = vsub.f32 %v760, %v1079
        %v1092 = vsub.f32 %v761, %v1075
        %v1093 = vsub.f32 %v761, %v1079
        %v1094 = vsub.f32 %v762, %v1075
        %v1095 = vsub.f32 %v762, %v1079
        %v1096 = vsub.f32 %v763, %v1075
        %v1097 = vsub.f32 %v763, %v1079
        %v1098 = vsub.f32 %v764, %v1075
        %v1099 = vsub.f32 %v764, %v1079
        %v1100 = vsub.f32 %v765, %v1075
        %v1101 = vsub.f32 %v765, %v1079
        %v1102 = vsub.f32 %v766, %v1075
        %v1103 = vsub.f32 %v766, %v1079
        %v1104 = vsub.f32 %v767, %v1075
        %v1105 = vsub.f32 %v767, %v1079
        %v1106 = vsub.f32 %v768, %v1075
        %v1107 = vsub.f32 %v768, %v1079
        %v1108 = vsub.f32 %v769, %v1075
        %v1109 = vsub.f32 %v769, %v1079
        %v1110 = vsub.f32 %v770, %v1075
        %v1111 = vsub.f32 %v770, %v1079
        %v1112 = vsub.f32 %v771, %v1075
        %v1113 = vsub.f32 %v771, %v1079
        %v1114 = vsub.f32 %v772, %v1075
        %v1115 = vsub.f32 %v772, %v1079
        %v1116 = vsub.f32 %v773, %v1075
        %v1117 = vsub.f32 %v773, %v1079
        %v1118 = vsub.f32 %v774, %v1075
        %v1119 = vsub.f32 %v774, %v1079
        %v1120 = vsub.f32 %v775, %v1075
        %v1121 = vsub.f32 %v775, %v1079
        %v1122 = vsub.f32 %v776, %v1075
        %v1123 = vsub.f32 %v776, %v1079
        %v1124 = vsub.f32 %v777, %v1075
        %v1125 = vsub.f32 %v777, %v1079
        %v1126 = vsub.f32 %v778, %v1075
        %v1127 = vsub.f32 %v778, %v1079
        %v1128 = vsub.f32 %v779, %v1075
        %v1129 = vsub.f32 %v779, %v1079
        %v1130 = vsub.f32 %v780, %v1075
        %v1131 = vsub.f32 %v780, %v1079
        %v1132 = vsub.f32 %v781, %v1075
        %v1133 = vsub.f32 %v781, %v1079
        %v1134 = vsub.f32 %v782, %v1075
        %v1135 = vsub.f32 %v782, %v1079
        %v1136 = vsub.f32 %v783, %v1075
        %v1137 = vsub.f32 %v783, %v1079
        %v1138 = vsub.f32 %v784, %v1075
        %v1139 = vsub.f32 %v784, %v1079
        %v1140 = vsub.f32 %v785, %v1075
        %v1141 = vsub.f32 %v785, %v1079
        %v1142 = vsub.f32 %v786, %v1075
        %v1143 = vsub.f32 %v786, %v1079
        %v1144 = vand.u32 2147483647, %v1080
        %v1145 = vand.u32 2147483647, %v1081
        %v1146 = vand.u32 2147483647, %v1082
        %v1147 = vand.u32 2147483647, %v1083
        %v1148 = vand.u32 2147483647, %v1084
        %v1149 = vand.u32 2147483647, %v1085
        %v1150 = vand.u32 2147483647, %v1086
        %v1151 = vand.u32 2147483647, %v1087
        %v1152 = vand.u32 2147483647, %v1088
        %v1153 = vand.u32 2147483647, %v1089
        %v1154 = vand.u32 2147483647, %v1090
        %v1155 = vand.u32 2147483647, %v1091
        %v1156 = vand.u32 2147483647, %v1092
        %v1157 = vand.u32 2147483647, %v1093
        %v1158 = vand.u32 2147483647, %v1094
        %v1159 = vand.u32 2147483647, %v1095
        %v1160 = vand.u32 2147483647, %v1096
        %v1161 = vand.u32 2147483647, %v1097
        %v1162 = vand.u32 2147483647, %v1098
        %v1163 = vand.u32 2147483647, %v1099
        %v1164 = vand.u32 2147483647, %v1100
        %v1165 = vand.u32 2147483647, %v1101
        %v1166 = vand.u32 2147483647, %v1102
        %v1167 = vand.u32 2147483647, %v1103
        %v1168 = vand.u32 2147483647, %v1104
        %v1169 = vand.u32 2147483647, %v1105
        %v1170 = vand.u32 2147483647, %v1106
        %v1171 = vand.u32 2147483647, %v1107
        %v1172 = vand.u32 2147483647, %v1108
        %v1173 = vand.u32 2147483647, %v1109
        %v1174 = vand.u32 2147483647, %v1110
        %v1175 = vand.u32 2147483647, %v1111
        %v1176 = vand.u32 2147483647, %v1112
        %v1177 = vand.u32 2147483647, %v1113
        %v1178 = vand.u32 2147483647, %v1114
        %v1179 = vand.u32 2147483647, %v1115
        %v1180 = vand.u32 2147483647, %v1116
        %v1181 = vand.u32 2147483647, %v1117
        %v1182 = vand.u32 2147483647, %v1118
        %v1183 = vand.u32 2147483647, %v1119
        %v1184 = vand.u32 2147483647, %v1120
        %v1185 = vand.u32 2147483647, %v1121
        %v1186 = vand.u32 2147483647, %v1122
        %v1187 = vand.u32 2147483647, %v1123
        %v1188 = vand.u32 2147483647, %v1124
        %v1189 = vand.u32 2147483647, %v1125
        %v1190 = vand.u32 2147483647, %v1126
        %v1191 = vand.u32 2147483647, %v1127
        %v1192 = vand.u32 2147483647, %v1128
        %v1193 = vand.u32 2147483647, %v1129
        %v1194 = vand.u32 2147483647, %v1130
        %v1195 = vand.u32 2147483647, %v1131
        %v1196 = vand.u32 2147483647, %v1132
        %v1197 = vand.u32 2147483647, %v1133
        %v1198 = vand.u32 2147483647, %v1134
        %v1199 = vand.u32 2147483647, %v1135
        %v1200 = vand.u32 2147483647, %v1136
        %v1201 = vand.u32 2147483647, %v1137
        %v1202 = vand.u32 2147483647, %v1138
        %v1203 = vand.u32 2147483647, %v1139
        %v1204 = vand.u32 2147483647, %v1140
        %v1205 = vand.u32 2147483647, %v1141
        %v1206 = vand.u32 2147483647, %v1142
        %v1207 = vand.u32 2147483647, %v1143
        %v1208 = vsub.f32 1.0, %v1144
        %v1209 = vsub.f32 1.0, %v1145
        %v1210 = vsub.f32 1.0, %v1146
        %v1211 = vsub.f32 1.0, %v1147
        %v1212 = vsub.f32 1.0, %v1148
        %v1213 = vsub.f32 1.0, %v1149
        %v1214 = vsub.f32 1.0, %v1150
        %v1215 = vsub.f32 1.0, %v1151
        %v1216 = vsub.f32 1.0, %v1152
        %v1217 = vsub.f32 1.0, %v1153
        %v1218 = vsub.f32 1.0, %v1154
        %v1219 = vsub.f32 1.0, %v1155
        %v1220 = vsub.f32 1.0, %v1156
        %v1221 = vsub.f32 1.0, %v1157
        %v1222 = vsub.f32 1.0, %v1158
        %v1223 = vsub.f32 1.0, %v1159
        %v1224 = vsub.f32 1.0, %v1160
        %v1225 = vsub.f32 1.0, %v1161
        %v1226 = vsub.f32 1.0, %v1162
        %v1227 = vsub.f32 1.0, %v1163
        %v1228 = vsub.f32 1.0, %v1164
        %v1229 = vsub.f32 1.0, %v1165
        %v1230 = vsub.f32 1.0, %v1166
        %v1231 = vsub.f32 1.0, %v1167
        %v1232 = vsub.f32 1.0, %v1168
        %v1233 = vsub.f32 1.0, %v1169
        %v1234 = vsub.f32 1.0, %v1170
        %v1235 = vsub.f32 1.0, %v1171
        %v1236 = vsub.f32 1.0, %v1172
        %v1237 = vsub.f32 1.0, %v1173
        %v1238 = vsub.f32 1.0, %v1174
        %v1239 = vsub.f32 1.0, %v1175
        %v1240 = vsub.f32 1.0, %v1176
        %v1241 = vsub.f32 1.0, %v1177
        %v1242 = vsub.f32 1.0, %v1178
        %v1243 = vsub.f32 1.0, %v1179
        %v1244 = vsub.f32 1.0, %v1180
        %v1245 = vsub.f32 1.0, %v1181
        %v1246 = vsub.f32 1.0, %v1182
        %v1247 = vsub.f32 1.0, %v1183
        %v1248 = vsub.f32 1.0, %v1184
        %v1249 = vsub.f32 1.0, %v1185
        %v1250 = vsub.f32 1.0, %v1186
        %v1251 = vsub.f32 1.0, %v1187
        %v1252 = vsub.f32 1.0, %v1188
        %v1253 = vsub.f32 1.0, %v1189
        %v1254 = vsub.f32 1.0, %v1190
        %v1255 = vsub.f32 1.0, %v1191
        %v1256 = vsub.f32 1.0, %v1192
        %v1257 = vsub.f32 1.0, %v1193
        %v1258 = vsub.f32 1.0, %v1194
        %v1259 = vsub.f32 1.0, %v1195
        %v1260 = vsub.f32 1.0, %v1196
        %v1261 = vsub.f32 1.0, %v1197
        %v1262 = vsub.f32 1.0, %v1198
        %v1263 = vsub.f32 1.0, %v1199
        %v1264 = vsub.f32 1.0, %v1200
        %v1265 = vsub.f32 1.0, %v1201
        %v1266 = vsub.f32 1.0, %v1202
        %v1267 = vsub.f32 1.0, %v1203
        %v1268 = vsub.f32 1.0, %v1204
        %v1269 = vsub.f32 1.0, %v1205
        %v1270 = vsub.f32 1.0, %v1206
        %v1271 = vsub.f32 1.0, %v1207
        %v1272 = vmax.f32 %v1208, 0.0
        %v1273 = vmax.f32 %v1209, 0.0
        %v1274 = vmax.f32 %v1210, 0.0
        %v1275 = vmax.f32 %v1211, 0.0
        %v1276 = vmax.f32 %v1212, 0.0
        %v1277 = vmax.f32 %v1213, 0.0
        %v1278 = vmax.f32 %v1214, 0.0
        %v1279 = vmax.f32 %v1215, 0.0
        %v1280 = vmax.f32 %v1216, 0.0
        %v1281 = vmax.f32 %v1217, 0.0
        %v1282 = vmax.f32 %v1218, 0.0
        %v1283 = vmax.f32 %v1219, 0.0
        %v1284 = vmax.f32 %v1220, 0.0
        %v1285 = vmax.f32 %v1221, 0.0
        %v1286 = vmax.f32 %v1222, 0.0
        %v1287 = vmax.f32 %v1223, 0.0
        %v1288 = vmax.f32 %v1224, 0.0
        %v1289 = vmax.f32 %v1225, 0.0
        %v1290 = vmax.f32 %v1226, 0.0
        %v1291 = vmax.f32 %v1227, 0.0
        %v1292 = vmax.f32 %v1228, 0.0
        %v1293 = vmax.f32 %v1229, 0.0
        %v1294 = vmax.f32 %v1230, 0.0
        %v1295 = vmax.f32 %v1231, 0.0
        %v1296 = vmax.f32 %v1232, 0.0
        %v1297 = vmax.f32 %v1233, 0.0
        %v1298 = vmax.f32 %v1234, 0.0
        %v1299 = vmax.f32 %v1235, 0.0
        %v1300 = vmax.f32 %v1236, 0.0
        %v1301 = vmax.f32 %v1237, 0.0
        %v1302 = vmax.f32 %v1238, 0.0
        %v1303 = vmax.f32 %v1239, 0.0
        %v1304 = vmax.f32 %v1240, 0.0
        %v1305 = vmax.f32 %v1241, 0.0
        %v1306 = vmax.f32 %v1242, 0.0
        %v1307 = vmax.f32 %v1243, 0.0
        %v1308 = vmax.f32 %v1244, 0.0
        %v1309 = vmax.f32 %v1245, 0.0
        %v1310 = vmax.f32 %v1246, 0.0
        %v1311 = vmax.f32 %v1247, 0.0
        %v1312 = vmax.f32 %v1248, 0.0
        %v1313 = vmax.f32 %v1249, 0.0
        %v1314 = vmax.f32 %v1250, 0.0
        %v1315 = vmax.f32 %v1251, 0.0
        %v1316 = vmax.f32 %v1252, 0.0
        %v1317 = vmax.f32 %v1253, 0.0
        %v1318 = vmax.f32 %v1254, 0.0
        %v1319 = vmax.f32 %v1255, 0.0
        %v1320 = vmax.f32 %v1256, 0.0
        %v1321 = vmax.f32 %v1257, 0.0
        %v1322 = vmax.f32 %v1258, 0.0
        %v1323 = vmax.f32 %v1259, 0.0
        %v1324 = vmax.f32 %v1260, 0.0
        %v1325 = vmax.f32 %v1261, 0.0
        %v1326 = vmax.f32 %v1262, 0.0
        %v1327 = vmax.f32 %v1263, 0.0
        %v1328 = vmax.f32 %v1264, 0.0
        %v1329 = vmax.f32 %v1265, 0.0
        %v1330 = vmax.f32 %v1266, 0.0
        %v1331 = vmax.f32 %v1267, 0.0
        %v1332 = vmax.f32 %v1268, 0.0
        %v1333 = vmax.f32 %v1269, 0.0
        %v1334 = vmax.f32 %v1270, 0.0
        %v1335 = vmax.f32 %v1271, 0.0
        %v1336 = vmul.f32 %v998, %v1272
        %v1337 = vmul.f32 %v999, %v1273
        %v1338 = vmul.f32 %v1000, %v1274
        %v1339 = vmul.f32 %v1001, %v1275
        %v1340 = vmul.f32 %v1002, %v1276
        %v1341 = vmul.f32 %v1003, %v1277
        %v1342 = vmul.f32 %v1004, %v1278
        %v1343 = vmul.f32 %v1005, %v1279
        %v1344 = vmul.f32 %v1006, %v1280
        %v1345 = vmul.f32 %v1007, %v1281
        %v1346 = vmul.f32 %v1008, %v1282
        %v1347 = vmul.f32 %v1009, %v1283
        %v1348 = vmul.f32 %v1010, %v1284
        %v1349 = vmul.f32 %v1011, %v1285
        %v1350 = vmul.f32 %v1012, %v1286
        %v1351 = vmul.f32 %v1013, %v1287
        %v1352 = vmul.f32 %v1014, %v1288
        %v1353 = vmul.f32 %v1015, %v1289
        %v1354 = vmul.f32 %v1016, %v1290
        %v1355 = vmul.f32 %v1017, %v1291
        %v1356 = vmul.f32 %v1018, %v1292
        %v1357 = vmul.f32 %v1019, %v1293
        %v1358 = vmul.f32 %v1020, %v1294
        %v1359 = vmul.f32 %v1021, %v1295
        %v1360 = vmul.f32 %v1022, %v1296
        %v1361 = vmul.f32 %v1023, %v1297
        %v1362 = vmul.f32 %v1024, %v1298
        %v1363 = vmul.f32 %v1025, %v1299
        %v1364 = vmul.f32 %v1026, %v1300
        %v1365 = vmul.f32 %v1027, %v1301
        %v1366 = vmul.f32 %v1028, %v1302
        %v1367 = vmul.f32 %v1029, %v1303
        %v1368 = vmul.f32 %v1030, %v1304
        %v1369 = vmul.f32 %v1031, %v1305
        %v1370 = vmul.f32 %v1032, %v1306
        %v1371 = vmul.f32 %v1033, %v1307
        %v1372 = vmul.f32 %v1034, %v1308
        %v1373 = vmul.f32 %v1035, %v1309
        %v1374 = vmul.f32 %v1036, %v1310
        %v1375 = vmul.f32 %v1037, %v1311
        %v1376 = vmul.f32 %v1038, %v1312
        %v1377 = vmul.f32 %v1039, %v1313
        %v1378 = vmul.f32 %v1040, %v1314
        %v1379 = vmul.f32 %v1041, %v1315
        %v1380 = vmul.f32 %v1042, %v1316
        %v1381 = vmul.f32 %v1043, %v1317
        %v1382 = vmul.f32 %v1044, %v1318
        %v1383 = vmul.f32 %v1045, %v1319
        %v1384 = vmul.f32 %v1046, %v1320
        %v1385 = vmul.f32 %v1047, %v1321
        %v1386 = vmul.f32 %v1048, %v1322
        %v1387 = vmul.f32 %v1049, %v1323
        %v1388 = vmul.f32 %v1050, %v1324
        %v1389 = vmul.f32 %v1051, %v1325
        %v1390 = vmul.f32 %v1052, %v1326
        %v1391 = vmul.f32 %v1053, %v1327
        %v1392 = vmul.f32 %v1054, %v1328
        %v1393 = vmul.f32 %v1055, %v1329
        %v1394 = vmul.f32 %v1056, %v1330
        %v1395 = vmul.f32 %v1057, %v1331
        %v1396 = vmul.f32 %v1058, %v1332
        %v1397 = vmul.f32 %v1059, %v1333
        %v1398 = vmul.f32 %v1060, %v1334
        %v1399 = vmul.f32 %v1061, %v1335
        %v1400 = vld [vmem:[%s2] sm:$0xff]
        %v1401 = vld [vmem:[%s2 + $0x8] sm:$0xff]
        %1402 = vmatprep.subr.mxu0 %v1337
        %1403 = vmatpush1.msra.mxu0 %v1336
        %1404 = vmatprep.subr.mxu0 %v1339
        %1405 = vmatpush1.msra.mxu0 %v1338
        %1406 = vmatprep.subr.mxu0 %v1341
        %1407 = vmatpush1.msra.mxu0 %v1340
        %1408 = vmatprep.subr.mxu0 %v1343
        %1409 = vmatpush1.msra.mxu0 %v1342
        %1410 = vmatprep.subr.mxu0 %v1345
        %1411 = vmatpush1.msra.mxu0 %v1344
        %1412 = vmatprep.subr.mxu0 %v1347
        %1413 = vmatpush1.msra.mxu0 %v1346
        %1414 = vmatprep.subr.mxu0 %v1349
        %1415 = vmatpush1.msra.mxu0 %v1348
        %1416 = vmatprep.subr.mxu0 %v1351
        %1417 = vmatpush1.msra.mxu0 %v1350
        %1418 = vmatprep.subr.mxu0 %v1353
        %1419 = vmatpush1.msra.mxu0 %v1352
        %1420 = vmatprep.subr.mxu0 %v1355
        %1421 = vmatpush1.msra.mxu0 %v1354
        %1422 = vmatprep.subr.mxu0 %v1357
        %1423 = vmatpush1.msra.mxu0 %v1356
        %1424 = vmatprep.subr.mxu0 %v1359
        %1425 = vmatpush1.msra.mxu0 %v1358
        %1426 = vmatprep.subr.mxu0 %v1361
        %1427 = vmatpush1.msra.mxu0 %v1360
        %1428 = vmatprep.subr.mxu0 %v1363
        %1429 = vmatpush1.msra.mxu0 %v1362
        %1430 = vmatprep.subr.mxu0 %v1365
        %1431 = vmatpush1.msra.mxu0 %v1364
        %1432 = vmatprep.subr.mxu0 %v1367
        %1433 = vmatpush1.msra.mxu0 %v1366
        %1434 = vmatprep.subr.mxu0 %v1369
        %1435 = vmatpush1.msra.mxu0 %v1368
        %1436 = vmatprep.subr.mxu0 %v1371
        %1437 = vmatpush1.msra.mxu0 %v1370
        %1438 = vmatprep.subr.mxu0 %v1373
        %1439 = vmatpush1.msra.mxu0 %v1372
        %1440 = vmatprep.subr.mxu0 %v1375
        %1441 = vmatpush1.msra.mxu0 %v1374
        %1442 = vmatprep.subr.mxu0 %v1377
        %1443 = vmatpush1.msra.mxu0 %v1376
        %1444 = vmatprep.subr.mxu0 %v1379
        %1445 = vmatpush1.msra.mxu0 %v1378
        %1446 = vmatprep.subr.mxu0 %v1381
        %1447 = vmatpush1.msra.mxu0 %v1380
        %1448 = vmatprep.subr.mxu0 %v1383
        %1449 = vmatpush1.msra.mxu0 %v1382
        %1450 = vmatprep.subr.mxu0 %v1385
        %1451 = vmatpush1.msra.mxu0 %v1384
        %1452 = vmatprep.subr.mxu0 %v1387
        %1453 = vmatpush1.msra.mxu0 %v1386
        %1454 = vmatprep.subr.mxu0 %v1389
        %1455 = vmatpush1.msra.mxu0 %v1388
        %1456 = vmatprep.subr.mxu0 %v1391
        %1457 = vmatpush1.msra.mxu0 %v1390
        %1458 = vmatprep.subr.mxu0 %v1393
        %1459 = vmatpush1.msra.mxu0 %v1392
        %1460 = vmatprep.subr.mxu0 %v1395
        %1461 = vmatpush1.msra.mxu0 %v1394
        %1462 = vmatprep.subr.mxu0 %v1397
        %1463 = vmatpush1.msra.mxu0 %v1396
        %1464 = vmatprep.subr.mxu0 %v1399
        %1465 = vmatpush1.msra.mxu0 %v1398
        %1466 = vmatprep.mubr.f32.mxu0 %v1401
        %1467 = vmatmul.mubr.f32.gmra.mrb[0].mxu0 %v1400
        %v1468 = vpop.f32.mrb[0].mxu0
        %v1469 = vadd.f32 0.0, %v1468
        %v1470 = vpop.f32.mrb[0].mxu0
        %v1471 = vadd.f32 0.0, %v1470
        %1472 = vdwg.mxu0
        %v1473 = vld [vmem:[%s3] sm:$0xff]
        %v1474 = vld [vmem:[%s3 + $0x8] sm:$0xff]
        %v1475 = vld [vmem:[%s3 + $0x10] sm:$0xff]
        %v1476 = vld [vmem:[%s3 + $0x18] sm:$0xff]
        %v1477 = vld [vmem:[%s4] sm:$0xff]
        %v1478 = vld [vmem:[%s4 + $0x8] sm:$0xff]
        %v1479 = vld [vmem:[%s4 + $0x10] sm:$0xff]
        %v1480 = vld [vmem:[%s4 + $0x18] sm:$0xff]
        %1482 = vset.pattern.permute.xlu0 0
        %1483 = vperm.xlu0 %1482, %v1477
        %v1484 = vpop.permute.xlu0 %1483
        %1487 = vset.pattern.permute.xlu0 0
        %1488 = vperm.xlu0 %1487, %v1478
        %v1489 = vpop.permute.xlu0 %1488
        %1492 = vset.pattern.permute.xlu0 0
        %1493 = vperm.xlu0 %1492, %v1479
        %v1494 = vpop.permute.xlu0 %1493
        %1497 = vset.pattern.permute.xlu0 0
        %1498 = vperm.xlu0 %1497, %v1480
        %v1499 = vpop.permute.xlu0 %1498
        %vm1501 = vcmask 130048
        %v1503 = vsel %vm1501, %v1473, 0
        %v1506 = vsel %vm1501, %v1474, 0
        %v1509 = vsel %vm1501, %v1475, 0
        %v1512 = vsel %vm1501, %v1476, 0
        %1514 = vmatprep.subr.mxu0 %v632
        %1515 = vmatpush1.msra.mxu0 %v630
        %1516 = vmatprep.subr.mxu0 %v1471
        %1517 = vmatpush1.msra.mxu0 %v1469
        %1518 = vmatprep.subr.mxu0 0.0
        %1519 = vmatpush1.msra.mxu0 0.0
        %1520 = vmatprep.subr.mxu0 0.0
        %1521 = vmatpush1.msra.mxu0 0.0
        %1522 = vmatprep.subr.mxu0 0.0
        %1523 = vmatpush1.msra.mxu0 0.0
        %1524 = vmatprep.subr.mxu0 0.0
        %1525 = vmatpush1.msra.mxu0 0.0
        %1526 = vmatprep.subr.mxu0 0.0
        %1527 = vmatpush1.msra.mxu0 0.0
        %1528 = vmatprep.subr.mxu0 0.0
        %1529 = vmatpush1.msra.mxu0 0.0
        %1530 = vmatprep.subr.mxu0 0.0
        %1531 = vmatpush1.msra.mxu0 0.0
        %1532 = vmatprep.subr.mxu0 0.0
        %1533 = vmatpush1.msra.mxu0 0.0
        %1534 = vmatprep.subr.mxu0 0.0
        %1535 = vmatpush1.msra.mxu0 0.0
        %1536 = vmatprep.subr.mxu0 0.0
        %1537 = vmatpush1.msra.mxu0 0.0
        %1538 = vmatprep.subr.mxu0 0.0
        %1539 = vmatpush1.msra.mxu0 0.0
        %1540 = vmatprep.subr.mxu0 0.0
        %1541 = vmatpush1.msra.mxu0 0.0
        %1542 = vmatprep.subr.mxu0 0.0
        %1543 = vmatpush1.msra.mxu0 0.0
        %1544 = vmatprep.subr.mxu0 0.0
        %1545 = vmatpush1.msra.mxu0 0.0
        %1546 = vmatprep.subr.mxu0 0.0
        %1547 = vmatpush1.msra.mxu0 0.0
        %1548 = vmatprep.subr.mxu0 0.0
        %1549 = vmatpush1.msra.mxu0 0.0
        %1550 = vmatprep.subr.mxu0 0.0
        %1551 = vmatpush1.msra.mxu0 0.0
        %1552 = vmatprep.subr.mxu0 0.0
        %1553 = vmatpush1.msra.mxu0 0.0
        %1554 = vmatprep.subr.mxu0 0.0
        %1555 = vmatpush1.msra.mxu0 0.0
        %1556 = vmatprep.subr.mxu0 0.0
        %1557 = vmatpush1.msra.mxu0 0.0
        %1558 = vmatprep.subr.mxu0 0.0
        %1559 = vmatpush1.msra.mxu0 0.0
        %1560 = vmatprep.subr.mxu0 0.0
        %1561 = vmatpush1.msra.mxu0 0.0
        %1562 = vmatprep.subr.mxu0 0.0
        %1563 = vmatpush1.msra.mxu0 0.0
        %1564 = vmatprep.subr.mxu0 0.0
        %1565 = vmatpush1.msra.mxu0 0.0
        %1566 = vmatprep.subr.mxu0 0.0
        %1567 = vmatpush1.msra.mxu0 0.0
        %1568 = vmatprep.subr.mxu0 0.0
        %1569 = vmatpush1.msra.mxu0 0.0
        %1570 = vmatprep.subr.mxu0 0.0
        %1571 = vmatpush1.msra.mxu0 0.0
        %1572 = vmatprep.subr.mxu0 0.0
        %1573 = vmatpush1.msra.mxu0 0.0
        %1574 = vmatprep.subr.mxu0 0.0
        %1575 = vmatpush1.msra.mxu0 0.0
        %1576 = vmatprep.subr.mxu0 0.0
        %1577 = vmatpush1.msra.mxu0 0.0
        %1578 = vmatprep.mubr.f32.mxu0 0.0
        %1579 = vmatmul.mubr.f32.gmra.mrb[0].mxu0 %v1503
        %v1580 = vpop.f32.mrb[0].mxu0
        %v1581 = vadd.f32 %v1484, %v1580
        %v1582 = vpop.f32.mrb[0].mxu0
        %v1583 = vadd.f32 %v1484, %v1582
        %1584 = vmatprep.mubr.f32.mxu0 0.0
        %1585 = vmatmul.mubr.f32.gmra.mrb[0].mxu0 %v1506
        %v1586 = vpop.f32.mrb[0].mxu0
        %v1587 = vadd.f32 %v1489, %v1586
        %v1588 = vpop.f32.mrb[0].mxu0
        %v1589 = vadd.f32 %v1489, %v1588
        %1590 = vmatprep.mubr.f32.mxu0 0.0
        %1591 = vmatmul.mubr.f32.gmra.mrb[0].mxu0 %v1509
        %v1592 = vpop.f32.mrb[0].mxu0
        %v1593 = vadd.f32 %v1494, %v1592
        %v1594 = vpop.f32.mrb[0].mxu0
        %v1595 = vadd.f32 %v1494, %v1594
        %1596 = vmatprep.mubr.f32.mxu0 0.0
        %1597 = vmatmul.mubr.f32.gmra.mrb[0].mxu0 %v1512
        %v1598 = vpop.f32.mrb[0].mxu0
        %v1599 = vadd.f32 %v1499, %v1598
        %v1600 = vpop.f32.mrb[0].mxu0
        %v1601 = vadd.f32 %v1499, %v1600
        %1602 = vdwg.mxu0
        %v1603 = vmax.f32 %v1581, 0.0
        %v1604 = vmax.f32 %v1583, 0.0
        %v1605 = vmax.f32 %v1587, 0.0
        %v1606 = vmax.f32 %v1589, 0.0
        %v1607 = vmax.f32 %v1593, 0.0
        %v1608 = vmax.f32 %v1595, 0.0
        %v1609 = vmax.f32 %v1599, 0.0
        %v1610 = vmax.f32 %v1601, 0.0
        %v1611 = vld [vmem:[%s5] sm:$0xff]
        %v1612 = vld [vmem:[%s5 + $0x8] sm:$0xff]
        %v1613 = vld [vmem:[%s5 + $0x10] sm:$0xff]
        %v1614 = vld [vmem:[%s5 + $0x18] sm:$0xff]
        %v1615 = vld [vmem:[%s6] sm:$0xff]
        %v1616 = vld [vmem:[%s6 + $0x8] sm:$0xff]
        %v1617 = vld [vmem:[%s6 + $0x10] sm:$0xff]
        %v1618 = vld [vmem:[%s6 + $0x18] sm:$0xff]
        %1620 = vset.pattern.permute.xlu0 0
        %1621 = vperm.xlu0 %1620, %v1615
        %v1622 = vpop.permute.xlu0 %1621
        %1625 = vset.pattern.permute.xlu0 0
        %1626 = vperm.xlu0 %1625, %v1616
        %v1627 = vpop.permute.xlu0 %1626
        %1630 = vset.pattern.permute.xlu0 0
        %1631 = vperm.xlu0 %1630, %v1617
        %v1632 = vpop.permute.xlu0 %1631
        %1635 = vset.pattern.permute.xlu0 0
        %1636 = vperm.xlu0 %1635, %v1618
        %v1637 = vpop.permute.xlu0 %1636
        %vm1639 = vcmask 261120
        %v1641 = vsel %vm1639, %v1611, 0
        %v1644 = vsel %vm1639, %v1612, 0
        %v1647 = vsel %vm1639, %v1613, 0
        %v1650 = vsel %vm1639, %v1614, 0
        %1652 = vmatprep.subr.mxu0 %v1604
        %1653 = vmatpush1.msra.mxu0 %v1603
        %1654 = vmatprep.subr.mxu0 %v1606
        %1655 = vmatpush1.msra.mxu0 %v1605
        %1656 = vmatprep.subr.mxu0 %v1608
        %1657 = vmatpush1.msra.mxu0 %v1607
        %1658 = vmatprep.subr.mxu0 %v1610
        %1659 = vmatpush1.msra.mxu0 %v1609
        %1660 = vmatprep.subr.mxu0 0.0
        %1661 = vmatpush1.msra.mxu0 0.0
        %1662 = vmatprep.subr.mxu0 0.0
        %1663 = vmatpush1.msra.mxu0 0.0
        %1664 = vmatprep.subr.mxu0 0.0
        %1665 = vmatpush1.msra.mxu0 0.0
        %1666 = vmatprep.subr.mxu0 0.0
        %1667 = vmatpush1.msra.mxu0 0.0
        %1668 = vmatprep.subr.mxu0 0.0
        %1669 = vmatpush1.msra.mxu0 0.0
        %1670 = vmatprep.subr.mxu0 0.0
        %1671 = vmatpush1.msra.mxu0 0.0
        %1672 = vmatprep.subr.mxu0 0.0
        %1673 = vmatpush1.msra.mxu0 0.0
        %1674 = vmatprep.subr.mxu0 0.0
        %1675 = vmatpush1.msra.mxu0 0.0
        %1676 = vmatprep.subr.mxu0 0.0
        %1677 = vmatpush1.msra.mxu0 0.0
        %1678 = vmatprep.subr.mxu0 0.0
        %1679 = vmatpush1.msra.mxu0 0.0
        %1680 = vmatprep.subr.mxu0 0.0
        %1681 = vmatpush1.msra.mxu0 0.0
        %1682 = vmatprep.subr.mxu0 0.0
        %1683 = vmatpush1.msra.mxu0 0.0
        %1684 = vmatprep.subr.mxu0 0.0
        %1685 = vmatpush1.msra.mxu0 0.0
        %1686 = vmatprep.subr.mxu0 0.0
        %1687 = vmatpush1.msra.mxu0 0.0
        %1688 = vmatprep.subr.mxu0 0.0
        %1689 = vmatpush1.msra.mxu0 0.0
        %1690 = vmatprep.subr.mxu0 0.0
        %1691 = vmatpush1.msra.mxu0 0.0
        %1692 = vmatprep.subr.mxu0 0.0
        %1693 = vmatpush1.msra.mxu0 0.0
        %1694 = vmatprep.subr.mxu0 0.0
        %1695 = vmatpush1.msra.mxu0 0.0
        %1696 = vmatprep.subr.mxu0 0.0
        %1697 = vmatpush1.msra.mxu0 0.0
        %1698 = vmatprep.subr.mxu0 0.0
        %1699 = vmatpush1.msra.mxu0 0.0
        %1700 = vmatprep.subr.mxu0 0.0
        %1701 = vmatpush1.msra.mxu0 0.0
        %1702 = vmatprep.subr.mxu0 0.0
        %1703 = vmatpush1.msra.mxu0 0.0
        %1704 = vmatprep.subr.mxu0 0.0
        %1705 = vmatpush1.msra.mxu0 0.0
        %1706 = vmatprep.subr.mxu0 0.0
        %1707 = vmatpush1.msra.mxu0 0.0
        %1708 = vmatprep.subr.mxu0 0.0
        %1709 = vmatpush1.msra.mxu0 0.0
        %1710 = vmatprep.subr.mxu0 0.0
        %1711 = vmatpush1.msra.mxu0 0.0
        %1712 = vmatprep.subr.mxu0 0.0
        %1713 = vmatpush1.msra.mxu0 0.0
        %1714 = vmatprep.subr.mxu0 0.0
        %1715 = vmatpush1.msra.mxu0 0.0
        %1716 = vmatprep.mubr.f32.mxu0 0.0
        %1717 = vmatmul.mubr.f32.gmra.mrb[0].mxu0 %v1641
        %v1718 = vpop.f32.mrb[0].mxu0
        %v1719 = vadd.f32 %v1622, %v1718
        %v1720 = vpop.f32.mrb[0].mxu0
        %v1721 = vadd.f32 %v1622, %v1720
        %1722 = vmatprep.mubr.f32.mxu0 0.0
        %1723 = vmatmul.mubr.f32.gmra.mrb[0].mxu0 %v1644
        %v1724 = vpop.f32.mrb[0].mxu0
        %v1725 = vadd.f32 %v1627, %v1724
        %v1726 = vpop.f32.mrb[0].mxu0
        %v1727 = vadd.f32 %v1627, %v1726
        %1728 = vmatprep.mubr.f32.mxu0 0.0
        %1729 = vmatmul.mubr.f32.gmra.mrb[0].mxu0 %v1647
        %v1730 = vpop.f32.mrb[0].mxu0
        %v1731 = vadd.f32 %v1632, %v1730
        %v1732 = vpop.f32.mrb[0].mxu0
        %v1733 = vadd.f32 %v1632, %v1732
        %1734 = vmatprep.mubr.f32.mxu0 0.0
        %1735 = vmatmul.mubr.f32.gmra.mrb[0].mxu0 %v1650
        %v1736 = vpop.f32.mrb[0].mxu0
        %v1737 = vadd.f32 %v1637, %v1736
        %v1738 = vpop.f32.mrb[0].mxu0
        %v1739 = vadd.f32 %v1637, %v1738
        %1740 = vdwg.mxu0
        %v1741 = vmax.f32 %v1719, 0.0
        %v1742 = vmax.f32 %v1721, 0.0
        %v1743 = vmax.f32 %v1725, 0.0
        %v1744 = vmax.f32 %v1727, 0.0
        %v1745 = vmax.f32 %v1731, 0.0
        %v1746 = vmax.f32 %v1733, 0.0
        %v1747 = vmax.f32 %v1737, 0.0
        %v1748 = vmax.f32 %v1739, 0.0
        %v1749 = vld [vmem:[%s7] sm:$0xff]
        %v1750 = vld [vmem:[%s8] sm:$0xff]
        %1752 = vset.pattern.permute.xlu0 0
        %1753 = vperm.xlu0 %1752, %v1750
        %v1754 = vpop.permute.xlu0 %1753
        %v1757 = vsel %vm1639, %v1749, 0
        %1759 = vmatprep.subr.mxu0 %v1742
        %1760 = vmatpush1.msra.mxu0 %v1741
        %1761 = vmatprep.subr.mxu0 %v1744
        %1762 = vmatpush1.msra.mxu0 %v1743
        %1763 = vmatprep.subr.mxu0 %v1746
        %1764 = vmatpush1.msra.mxu0 %v1745
        %1765 = vmatprep.subr.mxu0 %v1748
        %1766 = vmatpush1.msra.mxu0 %v1747
        %1767 = vmatprep.subr.mxu0 0.0
        %1768 = vmatpush1.msra.mxu0 0.0
        %1769 = vmatprep.subr.mxu0 0.0
        %1770 = vmatpush1.msra.mxu0 0.0
        %1771 = vmatprep.subr.mxu0 0.0
        %1772 = vmatpush1.msra.mxu0 0.0
        %1773 = vmatprep.subr.mxu0 0.0
        %1774 = vmatpush1.msra.mxu0 0.0
        %1775 = vmatprep.subr.mxu0 0.0
        %1776 = vmatpush1.msra.mxu0 0.0
        %1777 = vmatprep.subr.mxu0 0.0
        %1778 = vmatpush1.msra.mxu0 0.0
        %1779 = vmatprep.subr.mxu0 0.0
        %1780 = vmatpush1.msra.mxu0 0.0
        %1781 = vmatprep.subr.mxu0 0.0
        %1782 = vmatpush1.msra.mxu0 0.0
        %1783 = vmatprep.subr.mxu0 0.0
        %1784 = vmatpush1.msra.mxu0 0.0
        %1785 = vmatprep.subr.mxu0 0.0
        %1786 = vmatpush1.msra.mxu0 0.0
        %1787 = vmatprep.subr.mxu0 0.0
        %1788 = vmatpush1.msra.mxu0 0.0
        %1789 = vmatprep.subr.mxu0 0.0
        %1790 = vmatpush1.msra.mxu0 0.0
        %1791 = vmatprep.subr.mxu0 0.0
        %1792 = vmatpush1.msra.mxu0 0.0
        %1793 = vmatprep.subr.mxu0 0.0
        %1794 = vmatpush1.msra.mxu0 0.0
        %1795 = vmatprep.subr.mxu0 0.0
        %1796 = vmatpush1.msra.mxu0 0.0
        %1797 = vmatprep.subr.mxu0 0.0
        %1798 = vmatpush1.msra.mxu0 0.0
        %1799 = vmatprep.subr.mxu0 0.0
        %1800 = vmatpush1.msra.mxu0 0.0
        %1801 = vmatprep.subr.mxu0 0.0
        %1802 = vmatpush1.msra.mxu0 0.0
        %1803 = vmatprep.subr.mxu0 0.0
        %1804 = vmatpush1.msra.mxu0 0.0
        %1805 = vmatprep.subr.mxu0 0.0
        %1806 = vmatpush1.msra.mxu0 0.0
        %1807 = vmatprep.subr.mxu0 0.0
        %1808 = vmatpush1.msra.mxu0 0.0
        %1809 = vmatprep.subr.mxu0 0.0
        %1810 = vmatpush1.msra.mxu0 0.0
        %1811 = vmatprep.subr.mxu0 0.0
        %1812 = vmatpush1.msra.mxu0 0.0
        %1813 = vmatprep.subr.mxu0 0.0
        %1814 = vmatpush1.msra.mxu0 0.0
        %1815 = vmatprep.subr.mxu0 0.0
        %1816 = vmatpush1.msra.mxu0 0.0
        %1817 = vmatprep.subr.mxu0 0.0
        %1818 = vmatpush1.msra.mxu0 0.0
        %1819 = vmatprep.subr.mxu0 0.0
        %1820 = vmatpush1.msra.mxu0 0.0
        %1821 = vmatprep.subr.mxu0 0.0
        %1822 = vmatpush1.msra.mxu0 0.0
        %1823 = vmatprep.mubr.f32.mxu0 0.0
        %1824 = vmatmul.mubr.f32.gmra.mrb[0].mxu0 %v1757
        %v1825 = vpop.f32.mrb[0].mxu0
        %v1826 = vadd.f32 %v1754, %v1825
        %v1827 = vpop.f32.mrb[0].mxu0
        %v1828 = vadd.f32 %v1754, %v1827
        %1829 = vdwg.mxu0
        %1830 = vst [vmem:[%s326] sm:$0xff] %v1826
        %1831 = vst [vmem:[%s326 + $0x8] sm:$0xff] %v1828
        %s1832 = sand.u32 %s225, 1
        %s1833 = scalar_lea.sflag [#allocation3], %s1832
        %s1834 = sand.u32 %s225, 1
        %s1835 = smul.addr %s1834, 16
        %s1836 = scalar_lea.vmem [#allocation2], %s1835
        // Predicated region
        $region57: #{tpu_custom_call.1} parent=55 // pred_check
          %p1837 = pneg %p235
        $region58: #{tpu_custom_call.1} parent=55 // pred_check_branch
          %1839 = sbr.rel (%p1837) target = $region60
        $region59: #{tpu_custom_call.1} parent=55 // pred_region
          %s1840 = smul.u32 2, %s23
          %s1842 = ssub.s32 256, 256
          %1843 = vsyncadd %s1833, %s1842
          %s1844 = smul.addr %s1840, 128
          %s1845 = scalar_lea.hbm %s9, %s1844
          %s1847 = sshll.u32 %s1836, 4
          %s1848 = int_to_ptr.vmem [resolvable:$true] %s1847
          %1850 = dma.vmem_to_hbm [thread:$0]  %s1848, 256, %s1845, %s1833
        $region60: #{tpu_custom_call.1} parent=55 // pred_fallthru
          _
      $region56: #{tpu_custom_call.1} parent=5 // pred_fallthru
        _
      %p1851 = scmp.le.s32.totalorder 2, %s18
      // Predicated region
      $region61: #{tpu_custom_call.1} parent=5 // pred_check
        %p1852 = pneg %p1851
      $region62: #{tpu_custom_call.1} parent=5 // pred_check_branch
        %1854 = sbr.rel (%p1852) target = $region64
      $region63: #{tpu_custom_call.1} parent=5 // pred_region
        %s1855 = ssub.s32 %s18, 2
        // Predicated region
        $region65: #{tpu_custom_call.1} parent=63 // pred_check
          %p1856 = pneg %p241
        $region66: #{tpu_custom_call.1} parent=63 // pred_check_branch
          %1858 = sbr.rel (%p1856) target = $region68
        $region67: #{tpu_custom_call.1} parent=63 // pred_region
          %s1859 = sand.u32 %s226, 1
          %s1860 = scalar_lea.sflag [#allocation3], %s1859
          %s1861 = sand.u32 %s226, 1
          %s1862 = smul.addr %s1861, 16
          %s1863 = scalar_lea.vmem [#allocation2], %s1862
          %1864 = dma.done %s1860, 256
        $region68: #{tpu_custom_call.1} parent=63 // pred_fallthru
          _
      $region64: #{tpu_custom_call.1} parent=5 // pred_fallthru
        _
    $region6: #{tpu_custom_call.1} parent=1 // loop_footer
      %s22 = sadd.s32 1, %s18
    $region7: #{tpu_custom_call.1} parent=1 // loop_footer_branch
      %17 = sbr.rel target = $region3
    $region8: #{tpu_custom_call.1} parent=1 // loop_exit
      _
    %1865 = vsyncpa [#allocation3], 1
    %s1866 = scalar_lea.sflag [#allocation3], 1
    %1867 = vsyncpa %s1866, 1

</llo_original>
